<compile_context>
chip_gen: v5e
topology: v5e:2x2
jax: 0.10.0
libtpu: 0.0.40
codegen_flags: <defaults>
</compile_context>

<pallas_src>
import jax
import jax.numpy as jnp
from jax.experimental import pallas as pl
from jax.experimental.pallas import tpu as pltpu

KERNEL_SIZES = (3, 4, 5)


def _round_up(x, m):
    return (x + m - 1) // m * m


def textcnn_kernel(ids_ref, table_ref, wf_ref, bias_pos_ref, wl_ref, bl_ref,
                   out_ref):
    """One batch block (TB rows) per grid step.

    ids_ref:      (TB, L_pad)   int32 token ids (zero-padded)
    table_ref:    (V_pad, E)    bf16 embedding table, vocab padded to 128-lane
    wf_ref:       (Kmax*E, 3C)  bf16 fused im2col conv weight (taps zero-padded)
    bias_pos_ref: (T_pad, 3C)   f32 per-position bias: conv bias where position t
                                is valid for that branch, -1e30 otherwise
    wl_ref:       (3C, NCP)     bf16 classifier weight, lane-dense padded columns
    bl_ref:       (1, NCP)      f32 classifier bias (padded)
    out_ref:      (TB, NCP)     f32 padded logits for this batch block
    """
    TB, L_pad = ids_ref.shape
    V_pad, E = table_ref.shape
    KE, C3 = wf_ref.shape
    T_pad = bias_pos_ref.shape[0]
    Kmax = KE // E

    # --- 1) Embedding lookup fused in-kernel as an exact one-hot matmul. ----
    # TODO(synk): for large vocabularies switch to a DMA row-gather from an HBM
    #             table (memory_space=pl.ANY + pltpu.make_async_copy); the
    #             one-hot matmul is only sensible while V_pad is a few hundred.
    ids = ids_ref[...]
    vocab_iota = jax.lax.broadcasted_iota(jnp.int32, (TB, L_pad, V_pad), 2)
    onehot = (ids[:, :, None] == vocab_iota).astype(jnp.bfloat16)
    # Host invariant: L_pad % 8 == 0 -> this reshape is a free, tile-aligned merge.
    e = jnp.dot(onehot.reshape(TB * L_pad, V_pad), table_ref[...],
                preferred_element_type=jnp.float32)
    e = e.astype(jnp.bfloat16).reshape(TB, L_pad, E)

    # --- 2) Fused conv branches as ONE im2col matmul (K = Kmax*E). ----------
    # lhs[:, k*E:(k+1)*E] = e[:, t+k, :]
    lhs = jnp.concatenate([e[:, k:k + T_pad, :] for k in range(Kmax)], axis=2)
    # Host invariant: T_pad % 8 == 0 -> sublane-aligned reshape, free relayout.
    acc = jnp.dot(lhs.reshape(TB * T_pad, KE), wf_ref[...],
                  preferred_element_type=jnp.float32)

    # --- 3) bias + validity fold + ReLU + max-over-time. ---------------------
    acc = jnp.maximum(acc.reshape(TB, T_pad, C3) + bias_pos_ref[...], 0.0)
    feat = jnp.max(acc, axis=1).astype(jnp.bfloat16)            # (TB, 3C)

    # --- 4) feature2label. ---------------------------------------------------
    out_ref[...] = (jnp.dot(feat, wl_ref[...], preferred_element_type=jnp.float32)
                    + bl_ref[...])


def textcnn_forward(x_ids, embed_table, conv_ws, conv_bs, wl, bl, *, block_b=16):
    """TextCNN forward.

    block_b=16 gives M = TB*T_pad = 256 with T_pad=16 (fills the v6e/v7x 256-wide
    MXU); use block_b=8 (M=128) on v5e. For much larger batch blocks, add an
    inner fori_loop over 16-row sub-blocks to keep the f32 accumulator in vregs.
    """
    B, L = x_ids.shape
    V, E = embed_table.shape
    C = conv_ws[0].shape[2]
    n_class = wl.shape[1]
    Kmin, Kmax = min(KERNEL_SIZES), max(KERNEL_SIZES)
    assert L >= Kmax, "sequence shorter than the largest conv kernel"

    T = L - Kmin + 1                              # longest valid-conv output length
    T_pad = _round_up(T, 8)                       # sublane-aligned time length
    L_pad = _round_up(T_pad + Kmax - 1, 8)        # covers the deepest tap, aligned
    B_pad = _round_up(B, block_b)
    V_pad = _round_up(V, 128)                     # lane-dense one-hot contraction
    NCP = _round_up(n_class, 128)                 # lane-dense logits width
    C3 = 3 * C
    assert T_pad % 8 == 0 and L_pad % 8 == 0      # in-kernel reshapes rely on this

    # Token ids, zero-padded. Pad id 0 is a valid row; padded time positions are
    # excluded from the max by the -1e30 bias fold, padded batch rows are sliced.
    ids_p = jnp.pad(x_ids.astype(jnp.int32), ((0, B_pad - B), (0, L_pad - L)))

    # Embedding table: bf16, vocab zero-padded to a full 128-lane contraction.
    table_p = jnp.pad(embed_table.astype(jnp.bfloat16), ((0, V_pad - V), (0, 0)))

    # Fuse the conv branches: pad taps to Kmax, concat channels, flatten for im2col.
    wf = jnp.concatenate(
        [jnp.pad(w, ((0, Kmax - K), (0, 0), (0, 0)))
         for w, K in zip(conv_ws, KERNEL_SIZES)], axis=2)        # (Kmax, E, 3C)
    wf = wf.reshape(Kmax * E, C3).astype(jnp.bfloat16)           # (Kmax*E, 3C)

    # Per-position bias: conv bias where position t is valid for that branch,
    # -1e30 (large finite, not -inf, to avoid NaN) otherwise.
    bf = jnp.concatenate(conv_bs, axis=1).astype(jnp.float32)    # (1, 3C)
    t_idx = jnp.arange(T_pad, dtype=jnp.int32)[:, None]
    valid = jnp.concatenate(
        [jnp.broadcast_to(t_idx < (L - K + 1), (T_pad, C)) for K in KERNEL_SIZES],
        axis=1)                                                  # (T_pad, 3C)
    bias_pos = jnp.where(valid, jnp.broadcast_to(bf, (T_pad, C3)),
                         jnp.float32(-1e30))

    wl_p = jnp.pad(wl, ((0, 0), (0, NCP - n_class))).astype(jnp.bfloat16)
    bl_p = jnp.pad(bl, ((0, 0), (0, NCP - n_class))).astype(jnp.float32)

    def const_spec(shape):
        n = len(shape)
        # TODO(synk): single-buffer these grid-invariant constants
        #             (pipeline_mode=pl.Buffered(1)) if C/E/V grow large.
        return pl.BlockSpec(shape, lambda b, _n=n: (0,) * _n)

    flops = 2 * B_pad * (L_pad * V_pad * E + T_pad * Kmax * E * C3 + C3 * NCP)
    bytes_accessed = (ids_p.size * 4 + table_p.size * 2 + wf.size * 2
                      + bias_pos.size * 4 + wl_p.size * 2 + bl_p.size * 4
                      + B_pad * NCP * 4)

    out = pl.pallas_call(
        textcnn_kernel,
        out_shape=jax.ShapeDtypeStruct((B_pad, NCP), jnp.float32),
        grid_spec=pl.GridSpec(
            grid=(B_pad // block_b,),
            in_specs=[
                pl.BlockSpec((block_b, L_pad), lambda b: (b, 0)),
                const_spec(table_p.shape),
                const_spec(wf.shape),
                const_spec(bias_pos.shape),
                const_spec(wl_p.shape),
                const_spec(bl_p.shape),
            ],
            out_specs=pl.BlockSpec((block_b, NCP), lambda b: (b, 0)),
        ),
        compiler_params=pltpu.CompilerParams(
            dimension_semantics=("parallel",)),
        cost_estimate=pl.CostEstimate(flops=flops, transcendentals=0,
                                      bytes_accessed=bytes_accessed),
    )(ids_p, table_p, wf, bias_pos, wl_p, bl_p)

    return out[:B, :n_class]


def textcnn_reference(x_ids, embed_table, conv_ws, conv_bs, wl, bl):
    """Pure-JAX f32 reference mirroring the PyTorch forward."""
    embed = jnp.take(embed_table, x_ids, axis=0)             # (B, L, E)
    pooled = []
    for w, bias, K in zip(conv_ws, conv_bs, KERNEL_SIZES):
        L = embed.shape[1]
        T = L - K + 1
        acc = jnp.zeros((embed.shape[0], T, w.shape[2]), jnp.float32)
        for k in range(K):
            acc = acc + jnp.einsum('ble,ec->blc', embed[:, k:k + T, :], w[k])
        acc = jax.nn.relu(acc + bias[None, :, :])             # (B, T, C)
        pooled.append(jnp.max(acc, axis=1))                   # (B, C)
    feat = jnp.concatenate(pooled, axis=1)                    # (B, 3C)
    return feat @ wl + bl                                     # (B, n_cls)


if __name__ == "__main__":
    # Small, deterministic synthetic config.
    vocab_size = 50
    embedding_dim = 32
    num_of_class = 4
    kernel_num = 16
    B, L = 2, 16

    key = jax.random.PRNGKey(0)
    keys = jax.random.split(key, 10)

    x_ids = jax.random.randint(keys[0], (B, L), 0, vocab_size, dtype=jnp.int32)
    embed_table = jax.random.normal(keys[1], (vocab_size, embedding_dim),
                                    dtype=jnp.float32) * 0.1

    conv_ws, conv_bs = [], []
    for i, K in enumerate(KERNEL_SIZES):
        conv_ws.append(jax.random.normal(keys[2 + i],
                                         (K, embedding_dim, kernel_num),
                                         dtype=jnp.float32) * 0.1)
        conv_bs.append(jax.random.normal(keys[5 + i], (1, kernel_num),
                                         dtype=jnp.float32) * 0.1)

    wl = jax.random.normal(keys[8], (3 * kernel_num, num_of_class),
                           dtype=jnp.float32) * 0.1
    bl = jax.random.normal(keys[9], (1, num_of_class), dtype=jnp.float32) * 0.1

    logits = textcnn_forward(x_ids, embed_table, conv_ws, conv_bs, wl, bl)
    logits = jax.block_until_ready(logits)

    ref = textcnn_reference(x_ids, embed_table, conv_ws, conv_bs, wl, bl)
    assert logits.shape == (B, num_of_class)
    # bf16 matmul operands (f32 accumulation) -> loosened tolerance vs f32 ref.
    assert jnp.allclose(logits, ref, atol=2e-2, rtol=2e-2), "mismatch vs reference"

    print("KERNEL_OK")
</pallas_src>

<mosaic_0001>
module attributes {stable_mosaic.version = 11 : i64} {
  func.func @textcnn_kernel(%arg0: i32, %arg1: memref<16x24xi32, #tpu.memory_space<vmem>>, %arg2: memref<128x32xbf16, #tpu.memory_space<vmem>>, %arg3: memref<160x48xbf16, #tpu.memory_space<vmem>>, %arg4: memref<16x48xf32, #tpu.memory_space<vmem>>, %arg5: memref<48x128xbf16, #tpu.memory_space<vmem>>, %arg6: memref<1x128xf32, #tpu.memory_space<vmem>>, %arg7: memref<16x128xf32, #tpu.memory_space<vmem>>) attributes {dimension_semantics = [#tpu.dimension_semantics<parallel>], iteration_bounds = array<i64: 1>, scalar_prefetch = 0 : i64, scratch_operands = 0 : i64, tpu.core_type = #tpu.core_type<tc>, window_params = [{transform_indices = @transform_0, window_bounds = array<i64: 16, 24>}, {pipeline_mode = #tpu.pipeline_mode<synchronous>, transform_indices = @transform_1, window_bounds = array<i64: 128, 32>}, {pipeline_mode = #tpu.pipeline_mode<synchronous>, transform_indices = @transform_2, window_bounds = array<i64: 160, 48>}, {pipeline_mode = #tpu.pipeline_mode<synchronous>, transform_indices = @transform_3, window_bounds = array<i64: 16, 48>}, {pipeline_mode = #tpu.pipeline_mode<synchronous>, transform_indices = @transform_4, window_bounds = array<i64: 48, 128>}, {pipeline_mode = #tpu.pipeline_mode<synchronous>, transform_indices = @transform_5, window_bounds = array<i64: 1, 128>}, {transform_indices = @transform_6, window_bounds = array<i64: 16, 128>}]} {
    %c0 = arith.constant 0 : index
    %c0_0 = arith.constant 0 : index
    %0 = vector.load %arg1[%c0, %c0_0] : memref<16x24xi32, #tpu.memory_space<vmem>>, vector<16x24xi32>
    %1 = tpu.iota {dimensions = array<i32: 2>} : vector<16x24x128xi32>
    %2 = vector.shape_cast %0 : vector<16x24xi32> to vector<16x24x1xi32>
    %3 = vector.broadcast %2 : vector<16x24x1xi32> to vector<16x24x128xi32>
    %4 = arith.cmpi eq, %3, %1 : vector<16x24x128xi32>
    %5 = arith.extui %4 : vector<16x24x128xi1> to vector<16x24x128xi32>
    %6 = arith.sitofp %5 : vector<16x24x128xi32> to vector<16x24x128xf32>
    %7 = arith.truncf %6 : vector<16x24x128xf32> to vector<16x24x128xbf16>
    %8 = vector.shape_cast %7 : vector<16x24x128xbf16> to vector<384x128xbf16>
    %c0_1 = arith.constant 0 : index
    %c0_2 = arith.constant 0 : index
    %9 = vector.load %arg2[%c0_1, %c0_2] : memref<128x32xbf16, #tpu.memory_space<vmem>>, vector<128x32xbf16>
    %cst = arith.constant dense<0.000000e+00> : vector<384x32xf32>
    %10 = tpu.matmul %8, %9, %cst {dimension_numbers = #tpu.dot_dimension_numbers<[1], [0], [0], [1], [0, 0, 1, 1], [], []>} : vector<384x128xbf16>, vector<128x32xbf16>, vector<384x32xf32> -> vector<384x32xf32>
    %11 = arith.truncf %10 : vector<384x32xf32> to vector<384x32xbf16>
    %12 = vector.shape_cast %11 : vector<384x32xbf16> to vector<16x24x32xbf16>
    %13 = vector.extract_strided_slice %12 {offsets = [0, 0, 0], sizes = [16, 16, 32], strides = [1, 1, 1]} : vector<16x24x32xbf16> to vector<16x16x32xbf16>
    %14 = vector.extract_strided_slice %12 {offsets = [0, 1, 0], sizes = [16, 16, 32], strides = [1, 1, 1]} : vector<16x24x32xbf16> to vector<16x16x32xbf16>
    %15 = vector.extract_strided_slice %12 {offsets = [0, 2, 0], sizes = [16, 16, 32], strides = [1, 1, 1]} : vector<16x24x32xbf16> to vector<16x16x32xbf16>
    %16 = vector.extract_strided_slice %12 {offsets = [0, 3, 0], sizes = [16, 16, 32], strides = [1, 1, 1]} : vector<16x24x32xbf16> to vector<16x16x32xbf16>
    %17 = vector.extract_strided_slice %12 {offsets = [0, 4, 0], sizes = [16, 16, 32], strides = [1, 1, 1]} : vector<16x24x32xbf16> to vector<16x16x32xbf16>
    %18 = tpu.concatenate %13, %14, %15, %16, %17 in 2 : vector<16x16x32xbf16>, vector<16x16x32xbf16>, vector<16x16x32xbf16>, vector<16x16x32xbf16>, vector<16x16x32xbf16> -> vector<16x16x160xbf16>
    %19 = vector.shape_cast %18 : vector<16x16x160xbf16> to vector<256x160xbf16>
    %c0_3 = arith.constant 0 : index
    %c0_4 = arith.constant 0 : index
    %20 = vector.load %arg3[%c0_3, %c0_4] : memref<160x48xbf16, #tpu.memory_space<vmem>>, vector<160x48xbf16>
    %cst_5 = arith.constant dense<0.000000e+00> : vector<256x48xf32>
    %21 = tpu.matmul %19, %20, %cst_5 {dimension_numbers = #tpu.dot_dimension_numbers<[1], [0], [0], [1], [0, 0, 1, 1], [], []>} : vector<256x160xbf16>, vector<160x48xbf16>, vector<256x48xf32> -> vector<256x48xf32>
    %22 = vector.shape_cast %21 : vector<256x48xf32> to vector<16x16x48xf32>
    %c0_6 = arith.constant 0 : index
    %c0_7 = arith.constant 0 : index
    %23 = vector.load %arg4[%c0_6, %c0_7] : memref<16x48xf32, #tpu.memory_space<vmem>>, vector<16x48xf32>
    %24 = vector.shape_cast %23 : vector<16x48xf32> to vector<1x16x48xf32>
    %25 = vector.broadcast %24 : vector<1x16x48xf32> to vector<16x16x48xf32>
    %26 = arith.addf %22, %25 : vector<16x16x48xf32>
    %cst_8 = arith.constant 0.000000e+00 : f32
    %27 = vector.broadcast %cst_8 : f32 to vector<16x16x48xf32>
    %28 = arith.maximumf %26, %27 : vector<16x16x48xf32>
    %cst_9 = arith.constant dense<0xFF800000> : vector<16x48xf32>
    %29 = vector.multi_reduction <maximumf>, %28, %cst_9 [1] : vector<16x16x48xf32> to vector<16x48xf32>
    %30 = arith.truncf %29 : vector<16x48xf32> to vector<16x48xbf16>
    %c0_10 = arith.constant 0 : index
    %c0_11 = arith.constant 0 : index
    %31 = vector.load %arg5[%c0_10, %c0_11] : memref<48x128xbf16, #tpu.memory_space<vmem>>, vector<48x128xbf16>
    %cst_12 = arith.constant dense<0.000000e+00> : vector<16x128xf32>
    %32 = tpu.matmul %30, %31, %cst_12 {dimension_numbers = #tpu.dot_dimension_numbers<[1], [0], [0], [1], [0, 0, 1, 1], [], []>} : vector<16x48xbf16>, vector<48x128xbf16>, vector<16x128xf32> -> vector<16x128xf32>
    %c0_13 = arith.constant 0 : index
    %c0_14 = arith.constant 0 : index
    %33 = vector.load %arg6[%c0_13, %c0_14] : memref<1x128xf32, #tpu.memory_space<vmem>>, vector<1x128xf32>
    %34 = vector.broadcast %33 : vector<1x128xf32> to vector<16x128xf32>
    %35 = arith.addf %32, %34 : vector<16x128xf32>
    %c0_15 = arith.constant 0 : index
    %c0_16 = arith.constant 0 : index
    %36 = vector.load %arg7[%c0_15, %c0_16] : memref<16x128xf32, #tpu.memory_space<vmem>>, vector<16x128xf32>
    tpu.vector_store %arg7[%c0_15, %c0_16], %35 {strides = array<i32>} : memref<16x128xf32, #tpu.memory_space<vmem>>, vector<16x128xf32>,
    return
  }
  func.func @transform_0(%arg0: i32) -> (i32, i32) {
    %c0_i32 = arith.constant 0 : i32
    %c0_i32_0 = arith.constant 0 : i32
    return %arg0, %c0_i32 : i32, i32
  }
  func.func @transform_1(%arg0: i32) -> (i32, i32) {
    %c0_i32 = arith.constant 0 : i32
    %c0_i32_0 = arith.constant 0 : i32
    %c0_i32_1 = arith.constant 0 : i32
    return %c0_i32, %c0_i32_0 : i32, i32
  }
  func.func @transform_2(%arg0: i32) -> (i32, i32) {
    %c0_i32 = arith.constant 0 : i32
    %c0_i32_0 = arith.constant 0 : i32
    %c0_i32_1 = arith.constant 0 : i32
    return %c0_i32, %c0_i32_0 : i32, i32
  }
  func.func @transform_3(%arg0: i32) -> (i32, i32) {
    %c0_i32 = arith.constant 0 : i32
    %c0_i32_0 = arith.constant 0 : i32
    %c0_i32_1 = arith.constant 0 : i32
    return %c0_i32, %c0_i32_0 : i32, i32
  }
  func.func @transform_4(%arg0: i32) -> (i32, i32) {
    %c0_i32 = arith.constant 0 : i32
    %c0_i32_0 = arith.constant 0 : i32
    %c0_i32_1 = arith.constant 0 : i32
    return %c0_i32, %c0_i32_0 : i32, i32
  }
  func.func @transform_5(%arg0: i32) -> (i32, i32) {
    %c0_i32 = arith.constant 0 : i32
    %c0_i32_0 = arith.constant 0 : i32
    %c0_i32_1 = arith.constant 0 : i32
    return %c0_i32, %c0_i32_0 : i32, i32
  }
  func.func @transform_6(%arg0: i32) -> (i32, i32) {
    %c0_i32 = arith.constant 0 : i32
    %c0_i32_0 = arith.constant 0 : i32
    return %arg0, %c0_i32 : i32, i32
  }
}

</mosaic_0001>

<llo_original>
// kernel: tpu_custom_call.1
$region0: #{tpu_custom_call.1}
  #allocation0 [shape = 'u32[]', space=smem, size = 0x4, offset = 0x4, fixed_abs, tag = 'smem constant byte address 0x4 - core index']
  #allocation1 [shape = 'u32[72,128]{1,0:T(1,128)}', space=vmem, size = 0x9000, scoped, tag = 'internal scratch']
  %s0 = inlined_call_operand.vmem [shape: s32[16,24], index: 0, kind: input, shape index: {}]
  %s1 = inlined_call_operand.vmem [shape: bf16[128,32], index: 1, kind: input, shape index: {}]
  %s2 = inlined_call_operand.vmem [shape: bf16[160,48], index: 2, kind: input, shape index: {}]
  %s3 = inlined_call_operand.vmem [shape: f32[16,48], index: 3, kind: input, shape index: {}]
  %s4 = inlined_call_operand.vmem [shape: bf16[48,128], index: 4, kind: input, shape index: {}]
  %s5 = inlined_call_operand.vmem [shape: f32[1,128], index: 5, kind: input, shape index: {}]
  %s6 = inlined_call_operand.hbm [shape: f32[16,128], index: 6, kind: output, shape index: {}]
  %s7 = sld [smem:[#allocation0]]
  $region34: #{tpu_custom_call.1} parent=0
    _
  %s9 = ssub.s32 1, %s7
  %s10 = scalar_select 0, %s9, %s7
  $region1: #{tpu_custom_call.1} parent=0
    #allocation2 [shape = 'u8[8192]{0}', space=vmem, size = 0x2000, scoped, tag = 'output window, operand 0, single buffered']
    #allocation3 [shape = 's32[1]{0}', space=sflag, size = 0x4, scoped, tag = 'scoped memory for tpu_custom_call.1']
    %11 = vsyncpa [#allocation3], 0
    // Predicated region
    $region2: #{tpu_custom_call.1} parent=1 // pred_check
      _
    $region3: #{tpu_custom_call.1} parent=1 // pred_check_branch
      %13 = sbr.rel (0) target = $region5
    $region4: #{tpu_custom_call.1} parent=1 // pred_region
      _
    $region5: #{tpu_custom_call.1} parent=1 // pred_fallthru
      _
    // Predicated region
    $region6: #{tpu_custom_call.1} parent=1 // pred_check
      _
    $region7: #{tpu_custom_call.1} parent=1 // pred_check_branch
      %15 = sbr.rel (0) target = $region9
    $region8: #{tpu_custom_call.1} parent=1 // pred_region
      _
    $region9: #{tpu_custom_call.1} parent=1 // pred_fallthru
      _
    // Predicated region
    $region10: #{tpu_custom_call.1} parent=1 // pred_check
      _
    $region11: #{tpu_custom_call.1} parent=1 // pred_check_branch
      %17 = sbr.rel (0) target = $region13
    $region12: #{tpu_custom_call.1} parent=1 // pred_region
      _
    $region13: #{tpu_custom_call.1} parent=1 // pred_fallthru
      _
    // Predicated region
    $region14: #{tpu_custom_call.1} parent=1 // pred_check
      _
    $region15: #{tpu_custom_call.1} parent=1 // pred_check_branch
      %19 = sbr.rel (0) target = $region17
    $region16: #{tpu_custom_call.1} parent=1 // pred_region
      _
    $region17: #{tpu_custom_call.1} parent=1 // pred_fallthru
      _
    // Predicated region
    $region18: #{tpu_custom_call.1} parent=1 // pred_check
      _
    $region19: #{tpu_custom_call.1} parent=1 // pred_check_branch
      %21 = sbr.rel (0) target = $region21
    $region20: #{tpu_custom_call.1} parent=1 // pred_region
      _
    $region21: #{tpu_custom_call.1} parent=1 // pred_fallthru
      _
    // Predicated region
    $region22: #{tpu_custom_call.1} parent=1 // pred_check
      _
    $region23: #{tpu_custom_call.1} parent=1 // pred_check_branch
      %23 = sbr.rel (0) target = $region25
    $region24: #{tpu_custom_call.1} parent=1 // pred_region
      _
    $region25: #{tpu_custom_call.1} parent=1 // pred_fallthru
      _
    %v25 = vld [vmem:[%s0] sm:$0xff]
    %v26 = vld [vmem:[%s0 + $0x8] sm:$0xff]
    %v27 = vlaneseq
    %v28 = vand.u32 %v27, 127
    %v29 = vperm.slane %v25, 0
    %v30 = vlaneseq
    %v31 = vshrl.u32 %v30, 7
    %33 = vset.pattern.permute.xlu0 %v31
    %34 = vperm.xlu0 %33, %v29
    %v35 = vpop.permute.xlu0 %34
    %v36 = vlaneseq
    %v37 = vshrl.u32 %v36, 7
    %v38 = vadd.s32 %v37, 8
    %39 = vset.pattern.permute.xlu0 %v38
    %40 = vperm.xlu0 %39, %v29
    %v41 = vpop.permute.xlu0 %40
    %v42 = vlaneseq
    %v43 = vshrl.u32 %v42, 7
    %v44 = vadd.s32 %v43, 16
    %45 = vset.pattern.permute.xlu0 %v44
    %46 = vperm.xlu0 %45, %v29
    %v47 = vpop.permute.xlu0 %46
    %v48 = vperm.slane %v25, 1
    %v49 = vlaneseq
    %v50 = vshrl.u32 %v49, 7
    %52 = vset.pattern.permute.xlu0 %v50
    %53 = vperm.xlu0 %52, %v48
    %v54 = vpop.permute.xlu0 %53
    %v55 = vlaneseq
    %v56 = vshrl.u32 %v55, 7
    %v57 = vadd.s32 %v56, 8
    %58 = vset.pattern.permute.xlu0 %v57
    %59 = vperm.xlu0 %58, %v48
    %v60 = vpop.permute.xlu0 %59
    %v61 = vlaneseq
    %v62 = vshrl.u32 %v61, 7
    %v63 = vadd.s32 %v62, 16
    %64 = vset.pattern.permute.xlu0 %v63
    %65 = vperm.xlu0 %64, %v48
    %v66 = vpop.permute.xlu0 %65
    %v67 = vperm.slane %v25, 2
    %v68 = vlaneseq
    %v69 = vshrl.u32 %v68, 7
    %71 = vset.pattern.permute.xlu0 %v69
    %72 = vperm.xlu0 %71, %v67
    %v73 = vpop.permute.xlu0 %72
    %v74 = vlaneseq
    %v75 = vshrl.u32 %v74, 7
    %v76 = vadd.s32 %v75, 8
    %77 = vset.pattern.permute.xlu0 %v76
    %78 = vperm.xlu0 %77, %v67
    %v79 = vpop.permute.xlu0 %78
    %v80 = vlaneseq
    %v81 = vshrl.u32 %v80, 7
    %v82 = vadd.s32 %v81, 16
    %83 = vset.pattern.permute.xlu0 %v82
    %84 = vperm.xlu0 %83, %v67
    %v85 = vpop.permute.xlu0 %84
    %v86 = vperm.slane %v25, 3
    %v87 = vlaneseq
    %v88 = vshrl.u32 %v87, 7
    %90 = vset.pattern.permute.xlu0 %v88
    %91 = vperm.xlu0 %90, %v86
    %v92 = vpop.permute.xlu0 %91
    %v93 = vlaneseq
    %v94 = vshrl.u32 %v93, 7
    %v95 = vadd.s32 %v94, 8
    %96 = vset.pattern.permute.xlu0 %v95
    %97 = vperm.xlu0 %96, %v86
    %v98 = vpop.permute.xlu0 %97
    %v99 = vlaneseq
    %v100 = vshrl.u32 %v99, 7
    %v101 = vadd.s32 %v100, 16
    %102 = vset.pattern.permute.xlu0 %v101
    %103 = vperm.xlu0 %102, %v86
    %v104 = vpop.permute.xlu0 %103
    %v105 = vperm.slane %v25, 4
    %v106 = vlaneseq
    %v107 = vshrl.u32 %v106, 7
    %109 = vset.pattern.permute.xlu0 %v107
    %110 = vperm.xlu0 %109, %v105
    %v111 = vpop.permute.xlu0 %110
    %v112 = vlaneseq
    %v113 = vshrl.u32 %v112, 7
    %v114 = vadd.s32 %v113, 8
    %115 = vset.pattern.permute.xlu0 %v114
    %116 = vperm.xlu0 %115, %v105
    %v117 = vpop.permute.xlu0 %116
    %v118 = vlaneseq
    %v119 = vshrl.u32 %v118, 7
    %v120 = vadd.s32 %v119, 16
    %121 = vset.pattern.permute.xlu0 %v120
    %122 = vperm.xlu0 %121, %v105
    %v123 = vpop.permute.xlu0 %122
    %v124 = vperm.slane %v25, 5
    %v125 = vlaneseq
    %v126 = vshrl.u32 %v125, 7
    %128 = vset.pattern.permute.xlu0 %v126
    %129 = vperm.xlu0 %128, %v124
    %v130 = vpop.permute.xlu0 %129
    %v131 = vlaneseq
    %v132 = vshrl.u32 %v131, 7
    %v133 = vadd.s32 %v132, 8
    %134 = vset.pattern.permute.xlu0 %v133
    %135 = vperm.xlu0 %134, %v124
    %v136 = vpop.permute.xlu0 %135
    %v137 = vlaneseq
    %v138 = vshrl.u32 %v137, 7
    %v139 = vadd.s32 %v138, 16
    %140 = vset.pattern.permute.xlu0 %v139
    %141 = vperm.xlu0 %140, %v124
    %v142 = vpop.permute.xlu0 %141
    %v143 = vperm.slane %v25, 6
    %v144 = vlaneseq
    %v145 = vshrl.u32 %v144, 7
    %147 = vset.pattern.permute.xlu0 %v145
    %148 = vperm.xlu0 %147, %v143
    %v149 = vpop.permute.xlu0 %148
    %v150 = vlaneseq
    %v151 = vshrl.u32 %v150, 7
    %v152 = vadd.s32 %v151, 8
    %153 = vset.pattern.permute.xlu0 %v152
    %154 = vperm.xlu0 %153, %v143
    %v155 = vpop.permute.xlu0 %154
    %v156 = vlaneseq
    %v157 = vshrl.u32 %v156, 7
    %v158 = vadd.s32 %v157, 16
    %159 = vset.pattern.permute.xlu0 %v158
    %160 = vperm.xlu0 %159, %v143
    %v161 = vpop.permute.xlu0 %160
    %v162 = vperm.slane %v25, 7
    %v163 = vlaneseq
    %v164 = vshrl.u32 %v163, 7
    %166 = vset.pattern.permute.xlu0 %v164
    %167 = vperm.xlu0 %166, %v162
    %v168 = vpop.permute.xlu0 %167
    %v169 = vlaneseq
    %v170 = vshrl.u32 %v169, 7
    %v171 = vadd.s32 %v170, 8
    %172 = vset.pattern.permute.xlu0 %v171
    %173 = vperm.xlu0 %172, %v162
    %v174 = vpop.permute.xlu0 %173
    %v175 = vlaneseq
    %v176 = vshrl.u32 %v175, 7
    %v177 = vadd.s32 %v176, 16
    %178 = vset.pattern.permute.xlu0 %v177
    %179 = vperm.xlu0 %178, %v162
    %v180 = vpop.permute.xlu0 %179
    %v181 = vperm.slane %v26, 0
    %v182 = vlaneseq
    %v183 = vshrl.u32 %v182, 7
    %185 = vset.pattern.permute.xlu0 %v183
    %186 = vperm.xlu0 %185, %v181
    %v187 = vpop.permute.xlu0 %186
    %v188 = vlaneseq
    %v189 = vshrl.u32 %v188, 7
    %v190 = vadd.s32 %v189, 8
    %191 = vset.pattern.permute.xlu0 %v190
    %192 = vperm.xlu0 %191, %v181
    %v193 = vpop.permute.xlu0 %192
    %v194 = vlaneseq
    %v195 = vshrl.u32 %v194, 7
    %v196 = vadd.s32 %v195, 16
    %197 = vset.pattern.permute.xlu0 %v196
    %198 = vperm.xlu0 %197, %v181
    %v199 = vpop.permute.xlu0 %198
    %v200 = vperm.slane %v26, 1
    %v201 = vlaneseq
    %v202 = vshrl.u32 %v201, 7
    %204 = vset.pattern.permute.xlu0 %v202
    %205 = vperm.xlu0 %204, %v200
    %v206 = vpop.permute.xlu0 %205
    %v207 = vlaneseq
    %v208 = vshrl.u32 %v207, 7
    %v209 = vadd.s32 %v208, 8
    %210 = vset.pattern.permute.xlu0 %v209
    %211 = vperm.xlu0 %210, %v200
    %v212 = vpop.permute.xlu0 %211
    %v213 = vlaneseq
    %v214 = vshrl.u32 %v213, 7
    %v215 = vadd.s32 %v214, 16
    %216 = vset.pattern.permute.xlu0 %v215
    %217 = vperm.xlu0 %216, %v200
    %v218 = vpop.permute.xlu0 %217
    %v219 = vperm.slane %v26, 2
    %v220 = vlaneseq
    %v221 = vshrl.u32 %v220, 7
    %223 = vset.pattern.permute.xlu0 %v221
    %224 = vperm.xlu0 %223, %v219
    %v225 = vpop.permute.xlu0 %224
    %v226 = vlaneseq
    %v227 = vshrl.u32 %v226, 7
    %v228 = vadd.s32 %v227, 8
    %229 = vset.pattern.permute.xlu0 %v228
    %230 = vperm.xlu0 %229, %v219
    %v231 = vpop.permute.xlu0 %230
    %v232 = vlaneseq
    %v233 = vshrl.u32 %v232, 7
    %v234 = vadd.s32 %v233, 16
    %235 = vset.pattern.permute.xlu0 %v234
    %236 = vperm.xlu0 %235, %v219
    %v237 = vpop.permute.xlu0 %236
    %v238 = vperm.slane %v26, 3
    %v239 = vlaneseq
    %v240 = vshrl.u32 %v239, 7
    %242 = vset.pattern.permute.xlu0 %v240
    %243 = vperm.xlu0 %242, %v238
    %v244 = vpop.permute.xlu0 %243
    %v245 = vlaneseq
    %v246 = vshrl.u32 %v245, 7
    %v247 = vadd.s32 %v246, 8
    %248 = vset.pattern.permute.xlu0 %v247
    %249 = vperm.xlu0 %248, %v238
    %v250 = vpop.permute.xlu0 %249
    %v251 = vlaneseq
    %v252 = vshrl.u32 %v251, 7
    %v253 = vadd.s32 %v252, 16
    %254 = vset.pattern.permute.xlu0 %v253
    %255 = vperm.xlu0 %254, %v238
    %v256 = vpop.permute.xlu0 %255
    %v257 = vperm.slane %v26, 4
    %v258 = vlaneseq
    %v259 = vshrl.u32 %v258, 7
    %261 = vset.pattern.permute.xlu0 %v259
    %262 = vperm.xlu0 %261, %v257
    %v263 = vpop.permute.xlu0 %262
    %v264 = vlaneseq
    %v265 = vshrl.u32 %v264, 7
    %v266 = vadd.s32 %v265, 8
    %267 = vset.pattern.permute.xlu0 %v266
    %268 = vperm.xlu0 %267, %v257
    %v269 = vpop.permute.xlu0 %268
    %v270 = vlaneseq
    %v271 = vshrl.u32 %v270, 7
    %v272 = vadd.s32 %v271, 16
    %273 = vset.pattern.permute.xlu0 %v272
    %274 = vperm.xlu0 %273, %v257
    %v275 = vpop.permute.xlu0 %274
    %v276 = vperm.slane %v26, 5
    %v277 = vlaneseq
    %v278 = vshrl.u32 %v277, 7
    %280 = vset.pattern.permute.xlu0 %v278
    %281 = vperm.xlu0 %280, %v276
    %v282 = vpop.permute.xlu0 %281
    %v283 = vlaneseq
    %v284 = vshrl.u32 %v283, 7
    %v285 = vadd.s32 %v284, 8
    %286 = vset.pattern.permute.xlu0 %v285
    %287 = vperm.xlu0 %286, %v276
    %v288 = vpop.permute.xlu0 %287
    %v289 = vlaneseq
    %v290 = vshrl.u32 %v289, 7
    %v291 = vadd.s32 %v290, 16
    %292 = vset.pattern.permute.xlu0 %v291
    %293 = vperm.xlu0 %292, %v276
    %v294 = vpop.permute.xlu0 %293
    %v295 = vperm.slane %v26, 6
    %v296 = vlaneseq
    %v297 = vshrl.u32 %v296, 7
    %299 = vset.pattern.permute.xlu0 %v297
    %300 = vperm.xlu0 %299, %v295
    %v301 = vpop.permute.xlu0 %300
    %v302 = vlaneseq
    %v303 = vshrl.u32 %v302, 7
    %v304 = vadd.s32 %v303, 8
    %305 = vset.pattern.permute.xlu0 %v304
    %306 = vperm.xlu0 %305, %v295
    %v307 = vpop.permute.xlu0 %306
    %v308 = vlaneseq
    %v309 = vshrl.u32 %v308, 7
    %v310 = vadd.s32 %v309, 16
    %311 = vset.pattern.permute.xlu0 %v310
    %312 = vperm.xlu0 %311, %v295
    %v313 = vpop.permute.xlu0 %312
    %v314 = vperm.slane %v26, 7
    %v315 = vlaneseq
    %v316 = vshrl.u32 %v315, 7
    %318 = vset.pattern.permute.xlu0 %v316
    %319 = vperm.xlu0 %318, %v314
    %v320 = vpop.permute.xlu0 %319
    %v321 = vlaneseq
    %v322 = vshrl.u32 %v321, 7
    %v323 = vadd.s32 %v322, 8
    %324 = vset.pattern.permute.xlu0 %v323
    %325 = vperm.xlu0 %324, %v314
    %v326 = vpop.permute.xlu0 %325
    %v327 = vlaneseq
    %v328 = vshrl.u32 %v327, 7
    %v329 = vadd.s32 %v328, 16
    %330 = vset.pattern.permute.xlu0 %v329
    %331 = vperm.xlu0 %330, %v314
    %v332 = vpop.permute.xlu0 %331
    %vm333 = vcmp.eq.s32.totalorder %v35, %v28
    %vm334 = vcmp.eq.s32.totalorder %v41, %v28
    %vm335 = vcmp.eq.s32.totalorder %v47, %v28
    %vm336 = vcmp.eq.s32.totalorder %v54, %v28
    %vm337 = vcmp.eq.s32.totalorder %v60, %v28
    %vm338 = vcmp.eq.s32.totalorder %v66, %v28
    %vm339 = vcmp.eq.s32.totalorder %v73, %v28
    %vm340 = vcmp.eq.s32.totalorder %v79, %v28
    %vm341 = vcmp.eq.s32.totalorder %v85, %v28
    %vm342 = vcmp.eq.s32.totalorder %v92, %v28
    %vm343 = vcmp.eq.s32.totalorder %v98, %v28
    %vm344 = vcmp.eq.s32.totalorder %v104, %v28
    %vm345 = vcmp.eq.s32.totalorder %v111, %v28
    %vm346 = vcmp.eq.s32.totalorder %v117, %v28
    %vm347 = vcmp.eq.s32.totalorder %v123, %v28
    %vm348 = vcmp.eq.s32.totalorder %v130, %v28
    %vm349 = vcmp.eq.s32.totalorder %v136, %v28
    %vm350 = vcmp.eq.s32.totalorder %v142, %v28
    %vm351 = vcmp.eq.s32.totalorder %v149, %v28
    %vm352 = vcmp.eq.s32.totalorder %v155, %v28
    %vm353 = vcmp.eq.s32.totalorder %v161, %v28
    %vm354 = vcmp.eq.s32.totalorder %v168, %v28
    %vm355 = vcmp.eq.s32.totalorder %v174, %v28
    %vm356 = vcmp.eq.s32.totalorder %v180, %v28
    %vm357 = vcmp.eq.s32.totalorder %v187, %v28
    %vm358 = vcmp.eq.s32.totalorder %v193, %v28
    %vm359 = vcmp.eq.s32.totalorder %v199, %v28
    %vm360 = vcmp.eq.s32.totalorder %v206, %v28
    %vm361 = vcmp.eq.s32.totalorder %v212, %v28
    %vm362 = vcmp.eq.s32.totalorder %v218, %v28
    %vm363 = vcmp.eq.s32.totalorder %v225, %v28
    %vm364 = vcmp.eq.s32.totalorder %v231, %v28
    %vm365 = vcmp.eq.s32.totalorder %v237, %v28
    %vm366 = vcmp.eq.s32.totalorder %v244, %v28
    %vm367 = vcmp.eq.s32.totalorder %v250, %v28
    %vm368 = vcmp.eq.s32.totalorder %v256, %v28
    %vm369 = vcmp.eq.s32.totalorder %v263, %v28
    %vm370 = vcmp.eq.s32.totalorder %v269, %v28
    %vm371 = vcmp.eq.s32.totalorder %v275, %v28
    %vm372 = vcmp.eq.s32.totalorder %v282, %v28
    %vm373 = vcmp.eq.s32.totalorder %v288, %v28
    %vm374 = vcmp.eq.s32.totalorder %v294, %v28
    %vm375 = vcmp.eq.s32.totalorder %v301, %v28
    %vm376 = vcmp.eq.s32.totalorder %v307, %v28
    %vm377 = vcmp.eq.s32.totalorder %v313, %v28
    %vm378 = vcmp.eq.s32.totalorder %v320, %v28
    %vm379 = vcmp.eq.s32.totalorder %v326, %v28
    %vm380 = vcmp.eq.s32.totalorder %v332, %v28
    %v381 = vsel %vm333, 1, 0
    %v382 = vsel %vm334, 1, 0
    %v383 = vsel %vm335, 1, 0
    %v384 = vsel %vm336, 1, 0
    %v385 = vsel %vm337, 1, 0
    %v386 = vsel %vm338, 1, 0
    %v387 = vsel %vm339, 1, 0
    %v388 = vsel %vm340, 1, 0
    %v389 = vsel %vm341, 1, 0
    %v390 = vsel %vm342, 1, 0
    %v391 = vsel %vm343, 1, 0
    %v392 = vsel %vm344, 1, 0
    %v393 = vsel %vm345, 1, 0
    %v394 = vsel %vm346, 1, 0
    %v395 = vsel %vm347, 1, 0
    %v396 = vsel %vm348, 1, 0
    %v397 = vsel %vm349, 1, 0
    %v398 = vsel %vm350, 1, 0
    %v399 = vsel %vm351, 1, 0
    %v400 = vsel %vm352, 1, 0
    %v401 = vsel %vm353, 1, 0
    %v402 = vsel %vm354, 1, 0
    %v403 = vsel %vm355, 1, 0
    %v404 = vsel %vm356, 1, 0
    %v405 = vsel %vm357, 1, 0
    %v406 = vsel %vm358, 1, 0
    %v407 = vsel %vm359, 1, 0
    %v408 = vsel %vm360, 1, 0
    %v409 = vsel %vm361, 1, 0
    %v410 = vsel %vm362, 1, 0
    %v411 = vsel %vm363, 1, 0
    %v412 = vsel %vm364, 1, 0
    %v413 = vsel %vm365, 1, 0
    %v414 = vsel %vm366, 1, 0
    %v415 = vsel %vm367, 1, 0
    %v416 = vsel %vm368, 1, 0
    %v417 = vsel %vm369, 1, 0
    %v418 = vsel %vm370, 1, 0
    %v419 = vsel %vm371, 1, 0
    %v420 = vsel %vm372, 1, 0
    %v421 = vsel %vm373, 1, 0
    %v422 = vsel %vm374, 1, 0
    %v423 = vsel %vm375, 1, 0
    %v424 = vsel %vm376, 1, 0
    %v425 = vsel %vm377, 1, 0
    %v426 = vsel %vm378, 1, 0
    %v427 = vsel %vm379, 1, 0
    %v428 = vsel %vm380, 1, 0
    %v429 = vcvt.s32.f32 %v381
    %v430 = vcvt.s32.f32 %v382
    %v431 = vcvt.s32.f32 %v383
    %v432 = vcvt.s32.f32 %v384
    %v433 = vcvt.s32.f32 %v385
    %v434 = vcvt.s32.f32 %v386
    %v435 = vcvt.s32.f32 %v387
    %v436 = vcvt.s32.f32 %v388
    %v437 = vcvt.s32.f32 %v389
    %v438 = vcvt.s32.f32 %v390
    %v439 = vcvt.s32.f32 %v391
    %v440 = vcvt.s32.f32 %v392
    %v441 = vcvt.s32.f32 %v393
    %v442 = vcvt.s32.f32 %v394
    %v443 = vcvt.s32.f32 %v395
    %v444 = vcvt.s32.f32 %v396
    %v445 = vcvt.s32.f32 %v397
    %v446 = vcvt.s32.f32 %v398
    %v447 = vcvt.s32.f32 %v399
    %v448 = vcvt.s32.f32 %v400
    %v449 = vcvt.s32.f32 %v401
    %v450 = vcvt.s32.f32 %v402
    %v451 = vcvt.s32.f32 %v403
    %v452 = vcvt.s32.f32 %v404
    %v453 = vcvt.s32.f32 %v405
    %v454 = vcvt.s32.f32 %v406
    %v455 = vcvt.s32.f32 %v407
    %v456 = vcvt.s32.f32 %v408
    %v457 = vcvt.s32.f32 %v409
    %v458 = vcvt.s32.f32 %v410
    %v459 = vcvt.s32.f32 %v411
    %v460 = vcvt.s32.f32 %v412
    %v461 = vcvt.s32.f32 %v413
    %v462 = vcvt.s32.f32 %v414
    %v463 = vcvt.s32.f32 %v415
    %v464 = vcvt.s32.f32 %v416
    %v465 = vcvt.s32.f32 %v417
    %v466 = vcvt.s32.f32 %v418
    %v467 = vcvt.s32.f32 %v419
    %v468 = vcvt.s32.f32 %v420
    %v469 = vcvt.s32.f32 %v421
    %v470 = vcvt.s32.f32 %v422
    %v471 = vcvt.s32.f32 %v423
    %v472 = vcvt.s32.f32 %v424
    %v473 = vcvt.s32.f32 %v425
    %v474 = vcvt.s32.f32 %v426
    %v475 = vcvt.s32.f32 %v427
    %v476 = vcvt.s32.f32 %v428
    %v477 = vpack.c.bf16 %v429, %v429
    %v478 = vpack.c.bf16 %v430, %v430
    %v479 = vpack.c.bf16 %v431, %v431
    %v480 = vpack.c.bf16 %v432, %v432
    %v481 = vpack.c.bf16 %v433, %v433
    %v482 = vpack.c.bf16 %v434, %v434
    %v483 = vpack.c.bf16 %v435, %v435
    %v484 = vpack.c.bf16 %v436, %v436
    %v485 = vpack.c.bf16 %v437, %v437
    %v486 = vpack.c.bf16 %v438, %v438
    %v487 = vpack.c.bf16 %v439, %v439
    %v488 = vpack.c.bf16 %v440, %v440
    %v489 = vpack.c.bf16 %v441, %v441
    %v490 = vpack.c.bf16 %v442, %v442
    %v491 = vpack.c.bf16 %v443, %v443
    %v492 = vpack.c.bf16 %v444, %v444
    %v493 = vpack.c.bf16 %v445, %v445
    %v494 = vpack.c.bf16 %v446, %v446
    %v495 = vpack.c.bf16 %v447, %v447
    %v496 = vpack.c.bf16 %v448, %v448
    %v497 = vpack.c.bf16 %v449, %v449
    %v498 = vpack.c.bf16 %v450, %v450
    %v499 = vpack.c.bf16 %v451, %v451
    %v500 = vpack.c.bf16 %v452, %v452
    %v501 = vpack.c.bf16 %v453, %v453
    %v502 = vpack.c.bf16 %v454, %v454
    %v503 = vpack.c.bf16 %v455, %v455
    %v504 = vpack.c.bf16 %v456, %v456
    %v505 = vpack.c.bf16 %v457, %v457
    %v506 = vpack.c.bf16 %v458, %v458
    %v507 = vpack.c.bf16 %v459, %v459
    %v508 = vpack.c.bf16 %v460, %v460
    %v509 = vpack.c.bf16 %v461, %v461
    %v510 = vpack.c.bf16 %v462, %v462
    %v511 = vpack.c.bf16 %v463, %v463
    %v512 = vpack.c.bf16 %v464, %v464
    %v513 = vpack.c.bf16 %v465, %v465
    %v514 = vpack.c.bf16 %v466, %v466
    %v515 = vpack.c.bf16 %v467, %v467
    %v516 = vpack.c.bf16 %v468, %v468
    %v517 = vpack.c.bf16 %v469, %v469
    %v518 = vpack.c.bf16 %v470, %v470
    %v519 = vpack.c.bf16 %v471, %v471
    %v520 = vpack.c.bf16 %v472, %v472
    %v521 = vpack.c.bf16 %v473, %v473
    %v522 = vpack.c.bf16 %v474, %v474
    %v523 = vpack.c.bf16 %v475, %v475
    %v524 = vpack.c.bf16 %v476, %v476
    %v525 = vld [vmem:[%s1] sm:$0xf]
    %v526 = vld [vmem:[%s1 + $0x4] sm:$0xf]
    %v527 = vld [vmem:[%s1 + $0x8] sm:$0xf]
    %v528 = vld [vmem:[%s1 + $0xc] sm:$0xf]
    %v529 = vld [vmem:[%s1 + $0x10] sm:$0xf]
    %v530 = vld [vmem:[%s1 + $0x14] sm:$0xf]
    %v531 = vld [vmem:[%s1 + $0x18] sm:$0xf]
    %v532 = vld [vmem:[%s1 + $0x1c] sm:$0xf]
    %v533 = vld [vmem:[%s1 + $0x20] sm:$0xf]
    %v534 = vld [vmem:[%s1 + $0x24] sm:$0xf]
    %v535 = vld [vmem:[%s1 + $0x28] sm:$0xf]
    %v536 = vld [vmem:[%s1 + $0x2c] sm:$0xf]
    %v537 = vld [vmem:[%s1 + $0x30] sm:$0xf]
    %v538 = vld [vmem:[%s1 + $0x34] sm:$0xf]
    %v539 = vld [vmem:[%s1 + $0x38] sm:$0xf]
    %v540 = vld [vmem:[%s1 + $0x3c] sm:$0xf]
    %v589 = vunpack.c.l.b16 %v477
    %v590 = vunpack.c.l.b16 %v478
    %v591 = vunpack.c.l.b16 %v479
    %v592 = vunpack.c.l.b16 %v480
    %v593 = vunpack.c.l.b16 %v481
    %v594 = vunpack.c.l.b16 %v482
    %v595 = vunpack.c.l.b16 %v483
    %v596 = vunpack.c.l.b16 %v484
    %v597 = vunpack.c.l.b16 %v485
    %v598 = vunpack.c.l.b16 %v486
    %v599 = vunpack.c.l.b16 %v487
    %v600 = vunpack.c.l.b16 %v488
    %v601 = vunpack.c.l.b16 %v489
    %v602 = vunpack.c.l.b16 %v490
    %v603 = vunpack.c.l.b16 %v491
    %v604 = vunpack.c.l.b16 %v492
    %v605 = vunpack.c.l.b16 %v493
    %v606 = vunpack.c.l.b16 %v494
    %v607 = vunpack.c.l.b16 %v495
    %v608 = vunpack.c.l.b16 %v496
    %v609 = vunpack.c.l.b16 %v497
    %v610 = vunpack.c.l.b16 %v498
    %v611 = vunpack.c.l.b16 %v499
    %v612 = vunpack.c.l.b16 %v500
    %v613 = vunpack.c.l.b16 %v501
    %v614 = vunpack.c.l.b16 %v502
    %v615 = vunpack.c.l.b16 %v503
    %v616 = vunpack.c.l.b16 %v504
    %v617 = vunpack.c.l.b16 %v505
    %v618 = vunpack.c.l.b16 %v506
    %v619 = vunpack.c.l.b16 %v507
    %v620 = vunpack.c.l.b16 %v508
    %v621 = vunpack.c.l.b16 %v509
    %v622 = vunpack.c.l.b16 %v510
    %v623 = vunpack.c.l.b16 %v511
    %v624 = vunpack.c.l.b16 %v512
    %v625 = vunpack.c.l.b16 %v513
    %v626 = vunpack.c.l.b16 %v514
    %v627 = vunpack.c.l.b16 %v515
    %v628 = vunpack.c.l.b16 %v516
    %v629 = vunpack.c.l.b16 %v517
    %v630 = vunpack.c.l.b16 %v518
    %v631 = vunpack.c.l.b16 %v519
    %v632 = vunpack.c.l.b16 %v520
    %v633 = vunpack.c.l.b16 %v521
    %v634 = vunpack.c.l.b16 %v522
    %v635 = vunpack.c.l.b16 %v523
    %v636 = vunpack.c.l.b16 %v524
    %v637 = vpack.c.b16 %v590, %v589
    %v638 = vpack.c.b16 %v592, %v591
    %v639 = vpack.c.b16 %v594, %v593
    %v640 = vpack.c.b16 %v596, %v595
    %v641 = vpack.c.b16 %v598, %v597
    %v642 = vpack.c.b16 %v600, %v599
    %v643 = vpack.c.b16 %v602, %v601
    %v644 = vpack.c.b16 %v604, %v603
    %v645 = vpack.c.b16 %v606, %v605
    %v646 = vpack.c.b16 %v608, %v607
    %v647 = vpack.c.b16 %v610, %v609
    %v648 = vpack.c.b16 %v612, %v611
    %v649 = vpack.c.b16 %v614, %v613
    %v650 = vpack.c.b16 %v616, %v615
    %v651 = vpack.c.b16 %v618, %v617
    %v652 = vpack.c.b16 %v620, %v619
    %v653 = vpack.c.b16 %v622, %v621
    %v654 = vpack.c.b16 %v624, %v623
    %v655 = vpack.c.b16 %v626, %v625
    %v656 = vpack.c.b16 %v628, %v627
    %v657 = vpack.c.b16 %v630, %v629
    %v658 = vpack.c.b16 %v632, %v631
    %v659 = vpack.c.b16 %v634, %v633
    %v660 = vpack.c.b16 %v636, %v635
    %v701 = vunpack.c.l.b16 %v525
    %v702 = vunpack.c.l.b16 %v526
    %v703 = vunpack.c.l.b16 %v527
    %v704 = vunpack.c.l.b16 %v528
    %v705 = vunpack.c.l.b16 %v529
    %v706 = vunpack.c.l.b16 %v530
    %v707 = vunpack.c.l.b16 %v531
    %v708 = vunpack.c.l.b16 %v532
    %v709 = vunpack.c.l.b16 %v533
    %v710 = vunpack.c.l.b16 %v534
    %v711 = vunpack.c.l.b16 %v535
    %v712 = vunpack.c.l.b16 %v536
    %v713 = vunpack.c.l.b16 %v537
    %v714 = vunpack.c.l.b16 %v538
    %v715 = vunpack.c.l.b16 %v539
    %v716 = vunpack.c.l.b16 %v540
    %v717 = vpack.c.b16 %v702, %v701
    %v718 = vpack.c.b16 %v704, %v703
    %v719 = vpack.c.b16 %v706, %v705
    %v720 = vpack.c.b16 %v708, %v707
    %v721 = vpack.c.b16 %v710, %v709
    %v722 = vpack.c.b16 %v712, %v711
    %v723 = vpack.c.b16 %v714, %v713
    %v724 = vpack.c.b16 %v716, %v715
    %733 = vmatpush.bf16.msra.mxu0 %v724
    %734 = vmatpush.bf16.msra.mxu0 %v723
    %735 = vmatpush.bf16.msra.mxu0 %v722
    %736 = vmatpush.bf16.msra.mxu0 %v721
    %737 = vmatpush.bf16.msra.mxu0 %v720
    %738 = vmatpush.bf16.msra.mxu0 %v719
    %739 = vmatpush.bf16.msra.mxu0 %v718
    %740 = vmatpush.bf16.msra.mxu0 %v717
    %741 = vmatmul.bf16.gmra.mxu0 %v637
    %v742 = vpop.f32.mrf.mxu0
    %v743 = vadd.f32 0.0, %v742
    %v744 = vpop.f32.mrf.mxu0
    %v745 = vadd.f32 0.0, %v744
    %746 = vmatmul.bf16.gmra.mxu0 %v638
    %v747 = vpop.f32.mrf.mxu0
    %v748 = vadd.f32 0.0, %v747
    %v749 = vpop.f32.mrf.mxu0
    %v750 = vadd.f32 0.0, %v749
    %751 = vmatmul.bf16.gmra.mxu0 %v639
    %v752 = vpop.f32.mrf.mxu0
    %v753 = vadd.f32 0.0, %v752
    %v754 = vpop.f32.mrf.mxu0
    %v755 = vadd.f32 0.0, %v754
    %756 = vmatmul.bf16.gmra.mxu0 %v640
    %v757 = vpop.f32.mrf.mxu0
    %v758 = vadd.f32 0.0, %v757
    %v759 = vpop.f32.mrf.mxu0
    %v760 = vadd.f32 0.0, %v759
    %761 = vmatmul.bf16.gmra.mxu0 %v641
    %v762 = vpop.f32.mrf.mxu0
    %v763 = vadd.f32 0.0, %v762
    %v764 = vpop.f32.mrf.mxu0
    %v765 = vadd.f32 0.0, %v764
    %766 = vmatmul.bf16.gmra.mxu0 %v642
    %v767 = vpop.f32.mrf.mxu0
    %v768 = vadd.f32 0.0, %v767
    %v769 = vpop.f32.mrf.mxu0
    %v770 = vadd.f32 0.0, %v769
    %771 = vmatmul.bf16.gmra.mxu0 %v643
    %v772 = vpop.f32.mrf.mxu0
    %v773 = vadd.f32 0.0, %v772
    %v774 = vpop.f32.mrf.mxu0
    %v775 = vadd.f32 0.0, %v774
    %776 = vmatmul.bf16.gmra.mxu0 %v644
    %v777 = vpop.f32.mrf.mxu0
    %v778 = vadd.f32 0.0, %v777
    %v779 = vpop.f32.mrf.mxu0
    %v780 = vadd.f32 0.0, %v779
    %781 = vmatmul.bf16.gmra.mxu0 %v645
    %v782 = vpop.f32.mrf.mxu0
    %v783 = vadd.f32 0.0, %v782
    %v784 = vpop.f32.mrf.mxu0
    %v785 = vadd.f32 0.0, %v784
    %786 = vmatmul.bf16.gmra.mxu0 %v646
    %v787 = vpop.f32.mrf.mxu0
    %v788 = vadd.f32 0.0, %v787
    %v789 = vpop.f32.mrf.mxu0
    %v790 = vadd.f32 0.0, %v789
    %791 = vmatmul.bf16.gmra.mxu0 %v647
    %v792 = vpop.f32.mrf.mxu0
    %v793 = vadd.f32 0.0, %v792
    %v794 = vpop.f32.mrf.mxu0
    %v795 = vadd.f32 0.0, %v794
    %796 = vmatmul.bf16.gmra.mxu0 %v648
    %v797 = vpop.f32.mrf.mxu0
    %v798 = vadd.f32 0.0, %v797
    %v799 = vpop.f32.mrf.mxu0
    %v800 = vadd.f32 0.0, %v799
    %801 = vmatmul.bf16.gmra.mxu0 %v649
    %v802 = vpop.f32.mrf.mxu0
    %v803 = vadd.f32 0.0, %v802
    %v804 = vpop.f32.mrf.mxu0
    %v805 = vadd.f32 0.0, %v804
    %806 = vmatmul.bf16.gmra.mxu0 %v650
    %v807 = vpop.f32.mrf.mxu0
    %v808 = vadd.f32 0.0, %v807
    %v809 = vpop.f32.mrf.mxu0
    %v810 = vadd.f32 0.0, %v809
    %811 = vmatmul.bf16.gmra.mxu0 %v651
    %v812 = vpop.f32.mrf.mxu0
    %v813 = vadd.f32 0.0, %v812
    %v814 = vpop.f32.mrf.mxu0
    %v815 = vadd.f32 0.0, %v814
    %816 = vmatmul.bf16.gmra.mxu0 %v652
    %v817 = vpop.f32.mrf.mxu0
    %v818 = vadd.f32 0.0, %v817
    %v819 = vpop.f32.mrf.mxu0
    %v820 = vadd.f32 0.0, %v819
    %821 = vmatmul.bf16.gmra.mxu0 %v653
    %v822 = vpop.f32.mrf.mxu0
    %v823 = vadd.f32 0.0, %v822
    %v824 = vpop.f32.mrf.mxu0
    %v825 = vadd.f32 0.0, %v824
    %826 = vmatmul.bf16.gmra.mxu0 %v654
    %v827 = vpop.f32.mrf.mxu0
    %v828 = vadd.f32 0.0, %v827
    %v829 = vpop.f32.mrf.mxu0
    %v830 = vadd.f32 0.0, %v829
    %831 = vmatmul.bf16.gmra.mxu0 %v655
    %v832 = vpop.f32.mrf.mxu0
    %v833 = vadd.f32 0.0, %v832
    %v834 = vpop.f32.mrf.mxu0
    %v835 = vadd.f32 0.0, %v834
    %836 = vmatmul.bf16.gmra.mxu0 %v656
    %v837 = vpop.f32.mrf.mxu0
    %v838 = vadd.f32 0.0, %v837
    %v839 = vpop.f32.mrf.mxu0
    %v840 = vadd.f32 0.0, %v839
    %841 = vmatmul.bf16.gmra.mxu0 %v657
    %v842 = vpop.f32.mrf.mxu0
    %v843 = vadd.f32 0.0, %v842
    %v844 = vpop.f32.mrf.mxu0
    %v845 = vadd.f32 0.0, %v844
    %846 = vmatmul.bf16.gmra.mxu0 %v658
    %v847 = vpop.f32.mrf.mxu0
    %v848 = vadd.f32 0.0, %v847
    %v849 = vpop.f32.mrf.mxu0
    %v850 = vadd.f32 0.0, %v849
    %851 = vmatmul.bf16.gmra.mxu0 %v659
    %v852 = vpop.f32.mrf.mxu0
    %v853 = vadd.f32 0.0, %v852
    %v854 = vpop.f32.mrf.mxu0
    %v855 = vadd.f32 0.0, %v854
    %856 = vmatmul.bf16.gmra.mxu0 %v660
    %v857 = vpop.f32.mrf.mxu0
    %v858 = vadd.f32 0.0, %v857
    %v859 = vpop.f32.mrf.mxu0
    %v860 = vadd.f32 0.0, %v859
    %861 = vdwg.mxu0
    %v862 = vpack.c.bf16 %v743, %v743
    %v863 = vpack.c.bf16 %v745, %v745
    %v864 = vpack.c.bf16 %v748, %v748
    %v865 = vpack.c.bf16 %v750, %v750
    %v866 = vpack.c.bf16 %v753, %v753
    %v867 = vpack.c.bf16 %v755, %v755
    %v868 = vpack.c.bf16 %v758, %v758
    %v869 = vpack.c.bf16 %v760, %v760
    %v870 = vpack.c.bf16 %v763, %v763
    %v871 = vpack.c.bf16 %v765, %v765
    %v872 = vpack.c.bf16 %v768, %v768
    %v873 = vpack.c.bf16 %v770, %v770
    %v874 = vpack.c.bf16 %v773, %v773
    %v875 = vpack.c.bf16 %v775, %v775
    %v876 = vpack.c.bf16 %v778, %v778
    %v877 = vpack.c.bf16 %v780, %v780
    %v878 = vpack.c.bf16 %v783, %v783
    %v879 = vpack.c.bf16 %v785, %v785
    %v880 = vpack.c.bf16 %v788, %v788
    %v881 = vpack.c.bf16 %v790, %v790
    %v882 = vpack.c.bf16 %v793, %v793
    %v883 = vpack.c.bf16 %v795, %v795
    %v884 = vpack.c.bf16 %v798, %v798
    %v885 = vpack.c.bf16 %v800, %v800
    %v886 = vpack.c.bf16 %v803, %v803
    %v887 = vpack.c.bf16 %v805, %v805
    %v888 = vpack.c.bf16 %v808, %v808
    %v889 = vpack.c.bf16 %v810, %v810
    %v890 = vpack.c.bf16 %v813, %v813
    %v891 = vpack.c.bf16 %v815, %v815
    %v892 = vpack.c.bf16 %v818, %v818
    %v893 = vpack.c.bf16 %v820, %v820
    %v894 = vpack.c.bf16 %v823, %v823
    %v895 = vpack.c.bf16 %v825, %v825
    %v896 = vpack.c.bf16 %v828, %v828
    %v897 = vpack.c.bf16 %v830, %v830
    %v898 = vpack.c.bf16 %v833, %v833
    %v899 = vpack.c.bf16 %v835, %v835
    %v900 = vpack.c.bf16 %v838, %v838
    %v901 = vpack.c.bf16 %v840, %v840
    %v902 = vpack.c.bf16 %v843, %v843
    %v903 = vpack.c.bf16 %v845, %v845
    %v904 = vpack.c.bf16 %v848, %v848
    %v905 = vpack.c.bf16 %v850, %v850
    %v906 = vpack.c.bf16 %v853, %v853
    %v907 = vpack.c.bf16 %v855, %v855
    %v908 = vpack.c.bf16 %v858, %v858
    %v909 = vpack.c.bf16 %v860, %v860
    %v942 = vunpack.c.l.b16 %v862
    %v943 = vunpack.c.l.b16 %v863
    %v944 = vunpack.c.l.b16 %v865
    %v945 = vunpack.c.l.b16 %v866
    %v946 = vunpack.c.l.b16 %v868
    %v947 = vunpack.c.l.b16 %v869
    %v948 = vunpack.c.l.b16 %v871
    %v949 = vunpack.c.l.b16 %v872
    %v950 = vunpack.c.l.b16 %v874
    %v951 = vunpack.c.l.b16 %v875
    %v952 = vunpack.c.l.b16 %v877
    %v953 = vunpack.c.l.b16 %v878
    %v954 = vunpack.c.l.b16 %v880
    %v955 = vunpack.c.l.b16 %v881
    %v956 = vunpack.c.l.b16 %v883
    %v957 = vunpack.c.l.b16 %v884
    %v958 = vunpack.c.l.b16 %v886
    %v959 = vunpack.c.l.b16 %v887
    %v960 = vunpack.c.l.b16 %v889
    %v961 = vunpack.c.l.b16 %v890
    %v962 = vunpack.c.l.b16 %v892
    %v963 = vunpack.c.l.b16 %v893
    %v964 = vunpack.c.l.b16 %v895
    %v965 = vunpack.c.l.b16 %v896
    %v966 = vunpack.c.l.b16 %v898
    %v967 = vunpack.c.l.b16 %v899
    %v968 = vunpack.c.l.b16 %v901
    %v969 = vunpack.c.l.b16 %v902
    %v970 = vunpack.c.l.b16 %v904
    %v971 = vunpack.c.l.b16 %v905
    %v972 = vunpack.c.l.b16 %v907
    %v973 = vunpack.c.l.b16 %v908
    %v974 = vpack.c.b16 %v943, %v942
    %v975 = vpack.c.b16 %v945, %v944
    %v976 = vpack.c.b16 %v947, %v946
    %v977 = vpack.c.b16 %v949, %v948
    %v978 = vpack.c.b16 %v951, %v950
    %v979 = vpack.c.b16 %v953, %v952
    %v980 = vpack.c.b16 %v955, %v954
    %v981 = vpack.c.b16 %v957, %v956
    %v982 = vpack.c.b16 %v959, %v958
    %v983 = vpack.c.b16 %v961, %v960
    %v984 = vpack.c.b16 %v963, %v962
    %v985 = vpack.c.b16 %v965, %v964
    %v986 = vpack.c.b16 %v967, %v966
    %v987 = vpack.c.b16 %v969, %v968
    %v988 = vpack.c.b16 %v971, %v970
    %v989 = vpack.c.b16 %v973, %v972
    %v1006 = vunpack.c.l.b16 %v864
    %v1007 = vunpack.c.l.b16 %v867
    %v1008 = vunpack.c.l.b16 %v870
    %v1009 = vunpack.c.l.b16 %v873
    %v1010 = vunpack.c.l.b16 %v876
    %v1011 = vunpack.c.l.b16 %v879
    %v1012 = vunpack.c.l.b16 %v882
    %v1013 = vunpack.c.l.b16 %v885
    %v1014 = vunpack.c.l.b16 %v888
    %v1015 = vunpack.c.l.b16 %v891
    %v1016 = vunpack.c.l.b16 %v894
    %v1017 = vunpack.c.l.b16 %v897
    %v1018 = vunpack.c.l.b16 %v900
    %v1019 = vunpack.c.l.b16 %v903
    %v1020 = vunpack.c.l.b16 %v906
    %v1021 = vunpack.c.l.b16 %v909
    %v1022 = vpack.c.b16 %v1006, %v1006
    %v1023 = vpack.c.b16 %v1007, %v1007
    %v1024 = vpack.c.b16 %v1008, %v1008
    %v1025 = vpack.c.b16 %v1009, %v1009
    %v1026 = vpack.c.b16 %v1010, %v1010
    %v1027 = vpack.c.b16 %v1011, %v1011
    %v1028 = vpack.c.b16 %v1012, %v1012
    %v1029 = vpack.c.b16 %v1013, %v1013
    %v1030 = vpack.c.b16 %v1014, %v1014
    %v1031 = vpack.c.b16 %v1015, %v1015
    %v1032 = vpack.c.b16 %v1016, %v1016
    %v1033 = vpack.c.b16 %v1017, %v1017
    %v1034 = vpack.c.b16 %v1018, %v1018
    %v1035 = vpack.c.b16 %v1019, %v1019
    %v1036 = vpack.c.b16 %v1020, %v1020
    %v1037 = vpack.c.b16 %v1021, %v1021
    %vm1038 = vsmask.f32 7424
    %v1040 = vshrl.u32 %v974, 16
    %v1042 = vshll.u32 %v974, 16
    %v1044 = vrot.slane %v1042, 1
    %v1045 = vor.u32 %v1040, %v1044
    %v1047 = vshll.u32 %v1022, 16
    %v1049 = vrot.slane %v1047, 1
    %v1050 = vsel %vm1038, %v1045, %v1049
    %v1052 = vshrl.u32 %v975, 16
    %v1054 = vshll.u32 %v975, 16
    %v1056 = vrot.slane %v1054, 1
    %v1057 = vor.u32 %v1052, %v1056
    %v1059 = vshll.u32 %v1023, 16
    %v1061 = vrot.slane %v1059, 1
    %v1062 = vsel %vm1038, %v1057, %v1061
    %v1064 = vshrl.u32 %v976, 16
    %v1066 = vshll.u32 %v976, 16
    %v1068 = vrot.slane %v1066, 1
    %v1069 = vor.u32 %v1064, %v1068
    %v1071 = vshll.u32 %v1024, 16
    %v1073 = vrot.slane %v1071, 1
    %v1074 = vsel %vm1038, %v1069, %v1073
    %v1076 = vshrl.u32 %v977, 16
    %v1078 = vshll.u32 %v977, 16
    %v1080 = vrot.slane %v1078, 1
    %v1081 = vor.u32 %v1076, %v1080
    %v1083 = vshll.u32 %v1025, 16
    %v1085 = vrot.slane %v1083, 1
    %v1086 = vsel %vm1038, %v1081, %v1085
    %v1088 = vshrl.u32 %v978, 16
    %v1090 = vshll.u32 %v978, 16
    %v1092 = vrot.slane %v1090, 1
    %v1093 = vor.u32 %v1088, %v1092
    %v1095 = vshll.u32 %v1026, 16
    %v1097 = vrot.slane %v1095, 1
    %v1098 = vsel %vm1038, %v1093, %v1097
    %v1100 = vshrl.u32 %v979, 16
    %v1102 = vshll.u32 %v979, 16
    %v1104 = vrot.slane %v1102, 1
    %v1105 = vor.u32 %v1100, %v1104
    %v1107 = vshll.u32 %v1027, 16
    %v1109 = vrot.slane %v1107, 1
    %v1110 = vsel %vm1038, %v1105, %v1109
    %v1112 = vshrl.u32 %v980, 16
    %v1114 = vshll.u32 %v980, 16
    %v1116 = vrot.slane %v1114, 1
    %v1117 = vor.u32 %v1112, %v1116
    %v1119 = vshll.u32 %v1028, 16
    %v1121 = vrot.slane %v1119, 1
    %v1122 = vsel %vm1038, %v1117, %v1121
    %v1124 = vshrl.u32 %v981, 16
    %v1126 = vshll.u32 %v981, 16
    %v1128 = vrot.slane %v1126, 1
    %v1129 = vor.u32 %v1124, %v1128
    %v1131 = vshll.u32 %v1029, 16
    %v1133 = vrot.slane %v1131, 1
    %v1134 = vsel %vm1038, %v1129, %v1133
    %v1136 = vshrl.u32 %v982, 16
    %v1138 = vshll.u32 %v982, 16
    %v1140 = vrot.slane %v1138, 1
    %v1141 = vor.u32 %v1136, %v1140
    %v1143 = vshll.u32 %v1030, 16
    %v1145 = vrot.slane %v1143, 1
    %v1146 = vsel %vm1038, %v1141, %v1145
    %v1148 = vshrl.u32 %v983, 16
    %v1150 = vshll.u32 %v983, 16
    %v1152 = vrot.slane %v1150, 1
    %v1153 = vor.u32 %v1148, %v1152
    %v1155 = vshll.u32 %v1031, 16
    %v1157 = vrot.slane %v1155, 1
    %v1158 = vsel %vm1038, %v1153, %v1157
    %v1160 = vshrl.u32 %v984, 16
    %v1162 = vshll.u32 %v984, 16
    %v1164 = vrot.slane %v1162, 1
    %v1165 = vor.u32 %v1160, %v1164
    %v1167 = vshll.u32 %v1032, 16
    %v1169 = vrot.slane %v1167, 1
    %v1170 = vsel %vm1038, %v1165, %v1169
    %v1172 = vshrl.u32 %v985, 16
    %v1174 = vshll.u32 %v985, 16
    %v1176 = vrot.slane %v1174, 1
    %v1177 = vor.u32 %v1172, %v1176
    %v1179 = vshll.u32 %v1033, 16
    %v1181 = vrot.slane %v1179, 1
    %v1182 = vsel %vm1038, %v1177, %v1181
    %v1184 = vshrl.u32 %v986, 16
    %v1186 = vshll.u32 %v986, 16
    %v1188 = vrot.slane %v1186, 1
    %v1189 = vor.u32 %v1184, %v1188
    %v1191 = vshll.u32 %v1034, 16
    %v1193 = vrot.slane %v1191, 1
    %v1194 = vsel %vm1038, %v1189, %v1193
    %v1196 = vshrl.u32 %v987, 16
    %v1198 = vshll.u32 %v987, 16
    %v1200 = vrot.slane %v1198, 1
    %v1201 = vor.u32 %v1196, %v1200
    %v1203 = vshll.u32 %v1035, 16
    %v1205 = vrot.slane %v1203, 1
    %v1206 = vsel %vm1038, %v1201, %v1205
    %v1208 = vshrl.u32 %v988, 16
    %v1210 = vshll.u32 %v988, 16
    %v1212 = vrot.slane %v1210, 1
    %v1213 = vor.u32 %v1208, %v1212
    %v1215 = vshll.u32 %v1036, 16
    %v1217 = vrot.slane %v1215, 1
    %v1218 = vsel %vm1038, %v1213, %v1217
    %v1220 = vshrl.u32 %v989, 16
    %v1222 = vshll.u32 %v989, 16
    %v1224 = vrot.slane %v1222, 1
    %v1225 = vor.u32 %v1220, %v1224
    %v1227 = vshll.u32 %v1037, 16
    %v1229 = vrot.slane %v1227, 1
    %v1230 = vsel %vm1038, %v1225, %v1229
    %1231 = vrot.lane.b32.xlu0 %v1050, 32
    %v1232 = vpop.permute.xlu0 %1231
    %1233 = vrot.lane.b32.xlu0 %v1062, 32
    %v1234 = vpop.permute.xlu0 %1233
    %1235 = vrot.lane.b32.xlu0 %v1074, 32
    %v1236 = vpop.permute.xlu0 %1235
    %1237 = vrot.lane.b32.xlu0 %v1086, 32
    %v1238 = vpop.permute.xlu0 %1237
    %1239 = vrot.lane.b32.xlu0 %v1098, 32
    %v1240 = vpop.permute.xlu0 %1239
    %1241 = vrot.lane.b32.xlu0 %v1110, 32
    %v1242 = vpop.permute.xlu0 %1241
    %1243 = vrot.lane.b32.xlu0 %v1122, 32
    %v1244 = vpop.permute.xlu0 %1243
    %1245 = vrot.lane.b32.xlu0 %v1134, 32
    %v1246 = vpop.permute.xlu0 %1245
    %1247 = vrot.lane.b32.xlu0 %v1146, 32
    %v1248 = vpop.permute.xlu0 %1247
    %1249 = vrot.lane.b32.xlu0 %v1158, 32
    %v1250 = vpop.permute.xlu0 %1249
    %1251 = vrot.lane.b32.xlu0 %v1170, 32
    %v1252 = vpop.permute.xlu0 %1251
    %1253 = vrot.lane.b32.xlu0 %v1182, 32
    %v1254 = vpop.permute.xlu0 %1253
    %1255 = vrot.lane.b32.xlu0 %v1194, 32
    %v1256 = vpop.permute.xlu0 %1255
    %1257 = vrot.lane.b32.xlu0 %v1206, 32
    %v1258 = vpop.permute.xlu0 %1257
    %1259 = vrot.lane.b32.xlu0 %v1218, 32
    %v1260 = vpop.permute.xlu0 %1259
    %1261 = vrot.lane.b32.xlu0 %v1230, 32
    %v1262 = vpop.permute.xlu0 %1261
    %vm1263 = vcmask 1046528
    %v1264 = vrot.slane %v974, 1
    %v1265 = vrot.slane %v1022, 1
    %v1266 = vsel %vm1263, %v1264, %v1265
    %v1267 = vrot.slane %v975, 1
    %v1268 = vrot.slane %v1023, 1
    %v1269 = vsel %vm1263, %v1267, %v1268
    %v1270 = vrot.slane %v976, 1
    %v1271 = vrot.slane %v1024, 1
    %v1272 = vsel %vm1263, %v1270, %v1271
    %v1273 = vrot.slane %v977, 1
    %v1274 = vrot.slane %v1025, 1
    %v1275 = vsel %vm1263, %v1273, %v1274
    %v1276 = vrot.slane %v978, 1
    %v1277 = vrot.slane %v1026, 1
    %v1278 = vsel %vm1263, %v1276, %v1277
    %v1279 = vrot.slane %v979, 1
    %v1280 = vrot.slane %v1027, 1
    %v1281 = vsel %vm1263, %v1279, %v1280
    %v1282 = vrot.slane %v980, 1
    %v1283 = vrot.slane %v1028, 1
    %v1284 = vsel %vm1263, %v1282, %v1283
    %v1285 = vrot.slane %v981, 1
    %v1286 = vrot.slane %v1029, 1
    %v1287 = vsel %vm1263, %v1285, %v1286
    %v1288 = vrot.slane %v982, 1
    %v1289 = vrot.slane %v1030, 1
    %v1290 = vsel %vm1263, %v1288, %v1289
    %v1291 = vrot.slane %v983, 1
    %v1292 = vrot.slane %v1031, 1
    %v1293 = vsel %vm1263, %v1291, %v1292
    %v1294 = vrot.slane %v984, 1
    %v1295 = vrot.slane %v1032, 1
    %v1296 = vsel %vm1263, %v1294, %v1295
    %v1297 = vrot.slane %v985, 1
    %v1298 = vrot.slane %v1033, 1
    %v1299 = vsel %vm1263, %v1297, %v1298
    %v1300 = vrot.slane %v986, 1
    %v1301 = vrot.slane %v1034, 1
    %v1302 = vsel %vm1263, %v1300, %v1301
    %v1303 = vrot.slane %v987, 1
    %v1304 = vrot.slane %v1035, 1
    %v1305 = vsel %vm1263, %v1303, %v1304
    %v1306 = vrot.slane %v988, 1
    %v1307 = vrot.slane %v1036, 1
    %v1308 = vsel %vm1263, %v1306, %v1307
    %v1309 = vrot.slane %v989, 1
    %v1310 = vrot.slane %v1037, 1
    %v1311 = vsel %vm1263, %v1309, %v1310
    %1312 = vrot.lane.b32.xlu0 %v1266, 64
    %v1313 = vpop.permute.xlu0 %1312
    %1314 = vrot.lane.b32.xlu0 %v1269, 64
    %v1315 = vpop.permute.xlu0 %1314
    %1316 = vrot.lane.b32.xlu0 %v1272, 64
    %v1317 = vpop.permute.xlu0 %1316
    %1318 = vrot.lane.b32.xlu0 %v1275, 64
    %v1319 = vpop.permute.xlu0 %1318
    %1320 = vrot.lane.b32.xlu0 %v1278, 64
    %v1321 = vpop.permute.xlu0 %1320
    %1322 = vrot.lane.b32.xlu0 %v1281, 64
    %v1323 = vpop.permute.xlu0 %1322
    %1324 = vrot.lane.b32.xlu0 %v1284, 64
    %v1325 = vpop.permute.xlu0 %1324
    %1326 = vrot.lane.b32.xlu0 %v1287, 64
    %v1327 = vpop.permute.xlu0 %1326
    %1328 = vrot.lane.b32.xlu0 %v1290, 64
    %v1329 = vpop.permute.xlu0 %1328
    %1330 = vrot.lane.b32.xlu0 %v1293, 64
    %v1331 = vpop.permute.xlu0 %1330
    %1332 = vrot.lane.b32.xlu0 %v1296, 64
    %v1333 = vpop.permute.xlu0 %1332
    %1334 = vrot.lane.b32.xlu0 %v1299, 64
    %v1335 = vpop.permute.xlu0 %1334
    %1336 = vrot.lane.b32.xlu0 %v1302, 64
    %v1337 = vpop.permute.xlu0 %1336
    %1338 = vrot.lane.b32.xlu0 %v1305, 64
    %v1339 = vpop.permute.xlu0 %1338
    %1340 = vrot.lane.b32.xlu0 %v1308, 64
    %v1341 = vpop.permute.xlu0 %1340
    %1342 = vrot.lane.b32.xlu0 %v1311, 64
    %v1343 = vpop.permute.xlu0 %1342
    %vm1344 = vsmask.f32 6400
    %v1345 = vrot.slane %v1040, 1
    %v1346 = vrot.slane %v1042, 2
    %v1347 = vor.u32 %v1345, %v1346
    %v1348 = vshrl.u32 %v1022, 16
    %v1350 = vrot.slane %v1348, 1
    %v1351 = vrot.slane %v1047, 2
    %v1352 = vor.u32 %v1350, %v1351
    %v1353 = vsel %vm1344, %v1347, %v1352
    %v1354 = vrot.slane %v1052, 1
    %v1355 = vrot.slane %v1054, 2
    %v1356 = vor.u32 %v1354, %v1355
    %v1357 = vshrl.u32 %v1023, 16
    %v1359 = vrot.slane %v1357, 1
    %v1360 = vrot.slane %v1059, 2
    %v1361 = vor.u32 %v1359, %v1360
    %v1362 = vsel %vm1344, %v1356, %v1361
    %v1363 = vrot.slane %v1064, 1
    %v1364 = vrot.slane %v1066, 2
    %v1365 = vor.u32 %v1363, %v1364
    %v1366 = vshrl.u32 %v1024, 16
    %v1368 = vrot.slane %v1366, 1
    %v1369 = vrot.slane %v1071, 2
    %v1370 = vor.u32 %v1368, %v1369
    %v1371 = vsel %vm1344, %v1365, %v1370
    %v1372 = vrot.slane %v1076, 1
    %v1373 = vrot.slane %v1078, 2
    %v1374 = vor.u32 %v1372, %v1373
    %v1375 = vshrl.u32 %v1025, 16
    %v1377 = vrot.slane %v1375, 1
    %v1378 = vrot.slane %v1083, 2
    %v1379 = vor.u32 %v1377, %v1378
    %v1380 = vsel %vm1344, %v1374, %v1379
    %v1381 = vrot.slane %v1088, 1
    %v1382 = vrot.slane %v1090, 2
    %v1383 = vor.u32 %v1381, %v1382
    %v1384 = vshrl.u32 %v1026, 16
    %v1386 = vrot.slane %v1384, 1
    %v1387 = vrot.slane %v1095, 2
    %v1388 = vor.u32 %v1386, %v1387
    %v1389 = vsel %vm1344, %v1383, %v1388
    %v1390 = vrot.slane %v1100, 1
    %v1391 = vrot.slane %v1102, 2
    %v1392 = vor.u32 %v1390, %v1391
    %v1393 = vshrl.u32 %v1027, 16
    %v1395 = vrot.slane %v1393, 1
    %v1396 = vrot.slane %v1107, 2
    %v1397 = vor.u32 %v1395, %v1396
    %v1398 = vsel %vm1344, %v1392, %v1397
    %v1399 = vrot.slane %v1112, 1
    %v1400 = vrot.slane %v1114, 2
    %v1401 = vor.u32 %v1399, %v1400
    %v1402 = vshrl.u32 %v1028, 16
    %v1404 = vrot.slane %v1402, 1
    %v1405 = vrot.slane %v1119, 2
    %v1406 = vor.u32 %v1404, %v1405
    %v1407 = vsel %vm1344, %v1401, %v1406
    %v1408 = vrot.slane %v1124, 1
    %v1409 = vrot.slane %v1126, 2
    %v1410 = vor.u32 %v1408, %v1409
    %v1411 = vshrl.u32 %v1029, 16
    %v1413 = vrot.slane %v1411, 1
    %v1414 = vrot.slane %v1131, 2
    %v1415 = vor.u32 %v1413, %v1414
    %v1416 = vsel %vm1344, %v1410, %v1415
    %v1417 = vrot.slane %v1136, 1
    %v1418 = vrot.slane %v1138, 2
    %v1419 = vor.u32 %v1417, %v1418
    %v1420 = vshrl.u32 %v1030, 16
    %v1422 = vrot.slane %v1420, 1
    %v1423 = vrot.slane %v1143, 2
    %v1424 = vor.u32 %v1422, %v1423
    %v1425 = vsel %vm1344, %v1419, %v1424
    %v1426 = vrot.slane %v1148, 1
    %v1427 = vrot.slane %v1150, 2
    %v1428 = vor.u32 %v1426, %v1427
    %v1429 = vshrl.u32 %v1031, 16
    %v1431 = vrot.slane %v1429, 1
    %v1432 = vrot.slane %v1155, 2
    %v1433 = vor.u32 %v1431, %v1432
    %v1434 = vsel %vm1344, %v1428, %v1433
    %v1435 = vrot.slane %v1160, 1
    %v1436 = vrot.slane %v1162, 2
    %v1437 = vor.u32 %v1435, %v1436
    %v1438 = vshrl.u32 %v1032, 16
    %v1440 = vrot.slane %v1438, 1
    %v1441 = vrot.slane %v1167, 2
    %v1442 = vor.u32 %v1440, %v1441
    %v1443 = vsel %vm1344, %v1437, %v1442
    %v1444 = vrot.slane %v1172, 1
    %v1445 = vrot.slane %v1174, 2
    %v1446 = vor.u32 %v1444, %v1445
    %v1447 = vshrl.u32 %v1033, 16
    %v1449 = vrot.slane %v1447, 1
    %v1450 = vrot.slane %v1179, 2
    %v1451 = vor.u32 %v1449, %v1450
    %v1452 = vsel %vm1344, %v1446, %v1451
    %v1453 = vrot.slane %v1184, 1
    %v1454 = vrot.slane %v1186, 2
    %v1455 = vor.u32 %v1453, %v1454
    %v1456 = vshrl.u32 %v1034, 16
    %v1458 = vrot.slane %v1456, 1
    %v1459 = vrot.slane %v1191, 2
    %v1460 = vor.u32 %v1458, %v1459
    %v1461 = vsel %vm1344, %v1455, %v1460
    %v1462 = vrot.slane %v1196, 1
    %v1463 = vrot.slane %v1198, 2
    %v1464 = vor.u32 %v1462, %v1463
    %v1465 = vshrl.u32 %v1035, 16
    %v1467 = vrot.slane %v1465, 1
    %v1468 = vrot.slane %v1203, 2
    %v1469 = vor.u32 %v1467, %v1468
    %v1470 = vsel %vm1344, %v1464, %v1469
    %v1471 = vrot.slane %v1208, 1
    %v1472 = vrot.slane %v1210, 2
    %v1473 = vor.u32 %v1471, %v1472
    %v1474 = vshrl.u32 %v1036, 16
    %v1476 = vrot.slane %v1474, 1
    %v1477 = vrot.slane %v1215, 2
    %v1478 = vor.u32 %v1476, %v1477
    %v1479 = vsel %vm1344, %v1473, %v1478
    %v1480 = vrot.slane %v1220, 1
    %v1481 = vrot.slane %v1222, 2
    %v1482 = vor.u32 %v1480, %v1481
    %v1483 = vshrl.u32 %v1037, 16
    %v1485 = vrot.slane %v1483, 1
    %v1486 = vrot.slane %v1227, 2
    %v1487 = vor.u32 %v1485, %v1486
    %v1488 = vsel %vm1344, %v1482, %v1487
    %1489 = vrot.lane.b32.xlu0 %v1353, 96
    %v1490 = vpop.permute.xlu0 %1489
    %1491 = vrot.lane.b32.xlu0 %v1362, 96
    %v1492 = vpop.permute.xlu0 %1491
    %1493 = vrot.lane.b32.xlu0 %v1371, 96
    %v1494 = vpop.permute.xlu0 %1493
    %1495 = vrot.lane.b32.xlu0 %v1380, 96
    %v1496 = vpop.permute.xlu0 %1495
    %1497 = vrot.lane.b32.xlu0 %v1389, 96
    %v1498 = vpop.permute.xlu0 %1497
    %1499 = vrot.lane.b32.xlu0 %v1398, 96
    %v1500 = vpop.permute.xlu0 %1499
    %1501 = vrot.lane.b32.xlu0 %v1407, 96
    %v1502 = vpop.permute.xlu0 %1501
    %1503 = vrot.lane.b32.xlu0 %v1416, 96
    %v1504 = vpop.permute.xlu0 %1503
    %1505 = vrot.lane.b32.xlu0 %v1425, 96
    %v1506 = vpop.permute.xlu0 %1505
    %1507 = vrot.lane.b32.xlu0 %v1434, 96
    %v1508 = vpop.permute.xlu0 %1507
    %1509 = vrot.lane.b32.xlu0 %v1443, 96
    %v1510 = vpop.permute.xlu0 %1509
    %1511 = vrot.lane.b32.xlu0 %v1452, 96
    %v1512 = vpop.permute.xlu0 %1511
    %1513 = vrot.lane.b32.xlu0 %v1461, 96
    %v1514 = vpop.permute.xlu0 %1513
    %1515 = vrot.lane.b32.xlu0 %v1470, 96
    %v1516 = vpop.permute.xlu0 %1515
    %1517 = vrot.lane.b32.xlu0 %v1479, 96
    %v1518 = vpop.permute.xlu0 %1517
    %1519 = vrot.lane.b32.xlu0 %v1488, 96
    %v1520 = vpop.permute.xlu0 %1519
    %vm1521 = vcmask 1045504
    %v1522 = vrot.slane %v974, 2
    %v1523 = vrot.slane %v1022, 2
    %v1524 = vsel %vm1521, %v1522, %v1523
    %v1525 = vrot.slane %v975, 2
    %v1526 = vrot.slane %v1023, 2
    %v1527 = vsel %vm1521, %v1525, %v1526
    %v1528 = vrot.slane %v976, 2
    %v1529 = vrot.slane %v1024, 2
    %v1530 = vsel %vm1521, %v1528, %v1529
    %v1531 = vrot.slane %v977, 2
    %v1532 = vrot.slane %v1025, 2
    %v1533 = vsel %vm1521, %v1531, %v1532
    %v1534 = vrot.slane %v978, 2
    %v1535 = vrot.slane %v1026, 2
    %v1536 = vsel %vm1521, %v1534, %v1535
    %v1537 = vrot.slane %v979, 2
    %v1538 = vrot.slane %v1027, 2
    %v1539 = vsel %vm1521, %v1537, %v1538
    %v1540 = vrot.slane %v980, 2
    %v1541 = vrot.slane %v1028, 2
    %v1542 = vsel %vm1521, %v1540, %v1541
    %v1543 = vrot.slane %v981, 2
    %v1544 = vrot.slane %v1029, 2
    %v1545 = vsel %vm1521, %v1543, %v1544
    %v1546 = vrot.slane %v982, 2
    %v1547 = vrot.slane %v1030, 2
    %v1548 = vsel %vm1521, %v1546, %v1547
    %v1549 = vrot.slane %v983, 2
    %v1550 = vrot.slane %v1031, 2
    %v1551 = vsel %vm1521, %v1549, %v1550
    %v1552 = vrot.slane %v984, 2
    %v1553 = vrot.slane %v1032, 2
    %v1554 = vsel %vm1521, %v1552, %v1553
    %v1555 = vrot.slane %v985, 2
    %v1556 = vrot.slane %v1033, 2
    %v1557 = vsel %vm1521, %v1555, %v1556
    %v1558 = vrot.slane %v986, 2
    %v1559 = vrot.slane %v1034, 2
    %v1560 = vsel %vm1521, %v1558, %v1559
    %v1561 = vrot.slane %v987, 2
    %v1562 = vrot.slane %v1035, 2
    %v1563 = vsel %vm1521, %v1561, %v1562
    %v1564 = vrot.slane %v988, 2
    %v1565 = vrot.slane %v1036, 2
    %v1566 = vsel %vm1521, %v1564, %v1565
    %v1567 = vrot.slane %v989, 2
    %v1568 = vrot.slane %v1037, 2
    %v1569 = vsel %vm1521, %v1567, %v1568
    %vm1570 = vcmask 261120
    %v1572 = vsel %vm1570, %v974, %v1232
    %v1574 = vsel %vm1570, %v975, %v1234
    %v1576 = vsel %vm1570, %v976, %v1236
    %v1578 = vsel %vm1570, %v977, %v1238
    %v1580 = vsel %vm1570, %v978, %v1240
    %v1582 = vsel %vm1570, %v979, %v1242
    %v1584 = vsel %vm1570, %v980, %v1244
    %v1586 = vsel %vm1570, %v981, %v1246
    %v1588 = vsel %vm1570, %v982, %v1248
    %v1590 = vsel %vm1570, %v983, %v1250
    %v1592 = vsel %vm1570, %v984, %v1252
    %v1594 = vsel %vm1570, %v985, %v1254
    %v1596 = vsel %vm1570, %v986, %v1256
    %v1598 = vsel %vm1570, %v987, %v1258
    %v1600 = vsel %vm1570, %v988, %v1260
    %v1602 = vsel %vm1570, %v989, %v1262
    %vm1603 = vcmask 523264
    %v1605 = vsel %vm1603, %v1572, %v1313
    %v1607 = vsel %vm1603, %v1574, %v1315
    %v1609 = vsel %vm1603, %v1576, %v1317
    %v1611 = vsel %vm1603, %v1578, %v1319
    %v1613 = vsel %vm1603, %v1580, %v1321
    %v1615 = vsel %vm1603, %v1582, %v1323
    %v1617 = vsel %vm1603, %v1584, %v1325
    %v1619 = vsel %vm1603, %v1586, %v1327
    %v1621 = vsel %vm1603, %v1588, %v1329
    %v1623 = vsel %vm1603, %v1590, %v1331
    %v1625 = vsel %vm1603, %v1592, %v1333
    %v1627 = vsel %vm1603, %v1594, %v1335
    %v1629 = vsel %vm1603, %v1596, %v1337
    %v1631 = vsel %vm1603, %v1598, %v1339
    %v1633 = vsel %vm1603, %v1600, %v1341
    %v1635 = vsel %vm1603, %v1602, %v1343
    %vm1636 = vcmask 785408
    %v1638 = vsel %vm1636, %v1605, %v1490
    %v1641 = vsel %vm1636, %v1607, %v1492
    %v1644 = vsel %vm1636, %v1609, %v1494
    %v1647 = vsel %vm1636, %v1611, %v1496
    %v1650 = vsel %vm1636, %v1613, %v1498
    %v1653 = vsel %vm1636, %v1615, %v1500
    %v1656 = vsel %vm1636, %v1617, %v1502
    %v1659 = vsel %vm1636, %v1619, %v1504
    %v1662 = vsel %vm1636, %v1621, %v1506
    %v1665 = vsel %vm1636, %v1623, %v1508
    %v1668 = vsel %vm1636, %v1625, %v1510
    %v1671 = vsel %vm1636, %v1627, %v1512
    %v1674 = vsel %vm1636, %v1629, %v1514
    %v1677 = vsel %vm1636, %v1631, %v1516
    %v1680 = vsel %vm1636, %v1633, %v1518
    %v1683 = vsel %vm1636, %v1635, %v1520
    %v1685 = vld [vmem:[%s2] sm:$0xf]
    %v1686 = vld [vmem:[%s2 + $0x4] sm:$0xf]
    %v1687 = vld [vmem:[%s2 + $0x8] sm:$0xf]
    %v1688 = vld [vmem:[%s2 + $0xc] sm:$0xf]
    %v1689 = vld [vmem:[%s2 + $0x10] sm:$0xf]
    %v1690 = vld [vmem:[%s2 + $0x14] sm:$0xf]
    %v1691 = vld [vmem:[%s2 + $0x18] sm:$0xf]
    %v1692 = vld [vmem:[%s2 + $0x1c] sm:$0xf]
    %v1693 = vld [vmem:[%s2 + $0x20] sm:$0xf]
    %v1694 = vld [vmem:[%s2 + $0x24] sm:$0xf]
    %v1695 = vld [vmem:[%s2 + $0x28] sm:$0xf]
    %v1696 = vld [vmem:[%s2 + $0x2c] sm:$0xf]
    %v1697 = vld [vmem:[%s2 + $0x30] sm:$0xf]
    %v1698 = vld [vmem:[%s2 + $0x34] sm:$0xf]
    %v1699 = vld [vmem:[%s2 + $0x38] sm:$0xf]
    %v1700 = vld [vmem:[%s2 + $0x3c] sm:$0xf]
    %v1701 = vld [vmem:[%s2 + $0x40] sm:$0xf]
    %v1702 = vld [vmem:[%s2 + $0x44] sm:$0xf]
    %v1703 = vld [vmem:[%s2 + $0x48] sm:$0xf]
    %v1704 = vld [vmem:[%s2 + $0x4c] sm:$0xf]
    %v1725 = vunpack.c.l.b16 %v1685
    %v1726 = vunpack.c.l.b16 %v1686
    %v1727 = vunpack.c.l.b16 %v1687
    %v1728 = vunpack.c.l.b16 %v1688
    %v1729 = vunpack.c.l.b16 %v1689
    %v1730 = vunpack.c.l.b16 %v1690
    %v1731 = vunpack.c.l.b16 %v1691
    %v1732 = vunpack.c.l.b16 %v1692
    %v1733 = vunpack.c.l.b16 %v1693
    %v1734 = vunpack.c.l.b16 %v1694
    %v1735 = vunpack.c.l.b16 %v1695
    %v1736 = vunpack.c.l.b16 %v1696
    %v1737 = vunpack.c.l.b16 %v1697
    %v1738 = vunpack.c.l.b16 %v1698
    %v1739 = vunpack.c.l.b16 %v1699
    %v1740 = vunpack.c.l.b16 %v1700
    %v1741 = vunpack.c.l.b16 %v1701
    %v1742 = vunpack.c.l.b16 %v1702
    %v1743 = vunpack.c.l.b16 %v1703
    %v1744 = vunpack.c.l.b16 %v1704
    %v1745 = vpack.c.b16 %v1726, %v1725
    %v1746 = vpack.c.b16 %v1728, %v1727
    %v1747 = vpack.c.b16 %v1730, %v1729
    %v1748 = vpack.c.b16 %v1732, %v1731
    %v1749 = vpack.c.b16 %v1734, %v1733
    %v1750 = vpack.c.b16 %v1736, %v1735
    %v1751 = vpack.c.b16 %v1738, %v1737
    %v1752 = vpack.c.b16 %v1740, %v1739
    %v1753 = vpack.c.b16 %v1742, %v1741
    %v1754 = vpack.c.b16 %v1744, %v1743
    %v1766 = vsel %vm1570, %v1524, 0
    %v1769 = vsel %vm1570, %v1527, 0
    %v1772 = vsel %vm1570, %v1530, 0
    %v1775 = vsel %vm1570, %v1533, 0
    %v1778 = vsel %vm1570, %v1536, 0
    %v1781 = vsel %vm1570, %v1539, 0
    %v1784 = vsel %vm1570, %v1542, 0
    %v1787 = vsel %vm1570, %v1545, 0
    %v1790 = vsel %vm1570, %v1548, 0
    %v1793 = vsel %vm1570, %v1551, 0
    %v1796 = vsel %vm1570, %v1554, 0
    %v1799 = vsel %vm1570, %v1557, 0
    %v1802 = vsel %vm1570, %v1560, 0
    %v1805 = vsel %vm1570, %v1563, 0
    %v1808 = vsel %vm1570, %v1566, 0
    %v1811 = vsel %vm1570, %v1569, 0
    %1813 = vmatpush.bf16.msra.mxu0 %v1752
    %1814 = vmatpush.bf16.msra.mxu0 %v1751
    %1815 = vmatpush.bf16.msra.mxu0 %v1750
    %1816 = vmatpush.bf16.msra.mxu0 %v1749
    %1817 = vmatpush.bf16.msra.mxu0 %v1748
    %1818 = vmatpush.bf16.msra.mxu0 %v1747
    %1819 = vmatpush.bf16.msra.mxu0 %v1746
    %1820 = vmatpush.bf16.msra.mxu0 %v1745
    %1821 = vmatmul.bf16.gmra.mxu0 %v1638
    %v1822 = vpop.f32.mrf.mxu0
    %v1823 = vadd.f32 0.0, %v1822
    %v1824 = vpop.f32.mrf.mxu0
    %v1825 = vadd.f32 0.0, %v1824
    %1826 = vmatmul.bf16.gmra.mxu0 %v1641
    %v1827 = vpop.f32.mrf.mxu0
    %v1828 = vadd.f32 0.0, %v1827
    %v1829 = vpop.f32.mrf.mxu0
    %v1830 = vadd.f32 0.0, %v1829
    %1831 = vmatmul.bf16.gmra.mxu0 %v1644
    %v1832 = vpop.f32.mrf.mxu0
    %v1833 = vadd.f32 0.0, %v1832
    %v1834 = vpop.f32.mrf.mxu0
    %v1835 = vadd.f32 0.0, %v1834
    %1836 = vmatmul.bf16.gmra.mxu0 %v1647
    %v1837 = vpop.f32.mrf.mxu0
    %v1838 = vadd.f32 0.0, %v1837
    %v1839 = vpop.f32.mrf.mxu0
    %v1840 = vadd.f32 0.0, %v1839
    %1841 = vmatmul.bf16.gmra.mxu0 %v1650
    %v1842 = vpop.f32.mrf.mxu0
    %v1843 = vadd.f32 0.0, %v1842
    %v1844 = vpop.f32.mrf.mxu0
    %v1845 = vadd.f32 0.0, %v1844
    %1846 = vmatmul.bf16.gmra.mxu0 %v1653
    %v1847 = vpop.f32.mrf.mxu0
    %v1848 = vadd.f32 0.0, %v1847
    %v1849 = vpop.f32.mrf.mxu0
    %v1850 = vadd.f32 0.0, %v1849
    %1851 = vmatmul.bf16.gmra.mxu0 %v1656
    %v1852 = vpop.f32.mrf.mxu0
    %v1853 = vadd.f32 0.0, %v1852
    %v1854 = vpop.f32.mrf.mxu0
    %v1855 = vadd.f32 0.0, %v1854
    %1856 = vmatmul.bf16.gmra.mxu0 %v1659
    %v1857 = vpop.f32.mrf.mxu0
    %v1858 = vadd.f32 0.0, %v1857
    %v1859 = vpop.f32.mrf.mxu0
    %v1860 = vadd.f32 0.0, %v1859
    %1861 = vmatmul.bf16.gmra.mxu0 %v1662
    %v1862 = vpop.f32.mrf.mxu0
    %v1863 = vadd.f32 0.0, %v1862
    %v1864 = vpop.f32.mrf.mxu0
    %v1865 = vadd.f32 0.0, %v1864
    %1866 = vmatmul.bf16.gmra.mxu0 %v1665
    %v1867 = vpop.f32.mrf.mxu0
    %v1868 = vadd.f32 0.0, %v1867
    %v1869 = vpop.f32.mrf.mxu0
    %v1870 = vadd.f32 0.0, %v1869
    %1871 = vmatmul.bf16.gmra.mxu0 %v1668
    %v1872 = vpop.f32.mrf.mxu0
    %v1873 = vadd.f32 0.0, %v1872
    %v1874 = vpop.f32.mrf.mxu0
    %v1875 = vadd.f32 0.0, %v1874
    %1876 = vmatmul.bf16.gmra.mxu0 %v1671
    %v1877 = vpop.f32.mrf.mxu0
    %v1878 = vadd.f32 0.0, %v1877
    %v1879 = vpop.f32.mrf.mxu0
    %v1880 = vadd.f32 0.0, %v1879
    %1881 = vmatmul.bf16.gmra.mxu0 %v1674
    %v1882 = vpop.f32.mrf.mxu0
    %v1883 = vadd.f32 0.0, %v1882
    %v1884 = vpop.f32.mrf.mxu0
    %v1885 = vadd.f32 0.0, %v1884
    %1886 = vmatmul.bf16.gmra.mxu0 %v1677
    %v1887 = vpop.f32.mrf.mxu0
    %v1888 = vadd.f32 0.0, %v1887
    %v1889 = vpop.f32.mrf.mxu0
    %v1890 = vadd.f32 0.0, %v1889
    %1891 = vmatmul.bf16.gmra.mxu0 %v1680
    %v1892 = vpop.f32.mrf.mxu0
    %v1893 = vadd.f32 0.0, %v1892
    %v1894 = vpop.f32.mrf.mxu0
    %v1895 = vadd.f32 0.0, %v1894
    %1896 = vmatmul.bf16.gmra.mxu0 %v1683
    %v1897 = vpop.f32.mrf.mxu0
    %v1898 = vadd.f32 0.0, %v1897
    %v1899 = vpop.f32.mrf.mxu0
    %v1900 = vadd.f32 0.0, %v1899
    %1901 = vdwg.mxu0
    %1902 = vmatpush.bf16.msra.mxu0 0
    %1903 = vmatpush.bf16.msra.mxu0 0
    %1904 = vmatpush.bf16.msra.mxu0 0
    %1905 = vmatpush.bf16.msra.mxu0 0
    %1906 = vmatpush.bf16.msra.mxu0 0
    %1907 = vmatpush.bf16.msra.mxu0 0
    %1908 = vmatpush.bf16.msra.mxu0 %v1754
    %1909 = vmatpush.bf16.msra.mxu0 %v1753
    %1910 = vmatmul.bf16.gmra.mxu0 %v1766
    %v1911 = vpop.f32.mrf.mxu0
    %v1912 = vadd.f32 %v1823, %v1911
    %v1913 = vpop.f32.mrf.mxu0
    %v1914 = vadd.f32 %v1825, %v1913
    %1915 = vmatmul.bf16.gmra.mxu0 %v1769
    %v1916 = vpop.f32.mrf.mxu0
    %v1917 = vadd.f32 %v1828, %v1916
    %v1918 = vpop.f32.mrf.mxu0
    %v1919 = vadd.f32 %v1830, %v1918
    %1920 = vmatmul.bf16.gmra.mxu0 %v1772
    %v1921 = vpop.f32.mrf.mxu0
    %v1922 = vadd.f32 %v1833, %v1921
    %v1923 = vpop.f32.mrf.mxu0
    %v1924 = vadd.f32 %v1835, %v1923
    %1925 = vmatmul.bf16.gmra.mxu0 %v1775
    %v1926 = vpop.f32.mrf.mxu0
    %v1927 = vadd.f32 %v1838, %v1926
    %v1928 = vpop.f32.mrf.mxu0
    %v1929 = vadd.f32 %v1840, %v1928
    %1930 = vmatmul.bf16.gmra.mxu0 %v1778
    %v1931 = vpop.f32.mrf.mxu0
    %v1932 = vadd.f32 %v1843, %v1931
    %v1933 = vpop.f32.mrf.mxu0
    %v1934 = vadd.f32 %v1845, %v1933
    %1935 = vmatmul.bf16.gmra.mxu0 %v1781
    %v1936 = vpop.f32.mrf.mxu0
    %v1937 = vadd.f32 %v1848, %v1936
    %v1938 = vpop.f32.mrf.mxu0
    %v1939 = vadd.f32 %v1850, %v1938
    %1940 = vmatmul.bf16.gmra.mxu0 %v1784
    %v1941 = vpop.f32.mrf.mxu0
    %v1942 = vadd.f32 %v1853, %v1941
    %v1943 = vpop.f32.mrf.mxu0
    %v1944 = vadd.f32 %v1855, %v1943
    %1945 = vmatmul.bf16.gmra.mxu0 %v1787
    %v1946 = vpop.f32.mrf.mxu0
    %v1947 = vadd.f32 %v1858, %v1946
    %v1948 = vpop.f32.mrf.mxu0
    %v1949 = vadd.f32 %v1860, %v1948
    %1950 = vmatmul.bf16.gmra.mxu0 %v1790
    %v1951 = vpop.f32.mrf.mxu0
    %v1952 = vadd.f32 %v1863, %v1951
    %v1953 = vpop.f32.mrf.mxu0
    %v1954 = vadd.f32 %v1865, %v1953
    %1955 = vmatmul.bf16.gmra.mxu0 %v1793
    %v1956 = vpop.f32.mrf.mxu0
    %v1957 = vadd.f32 %v1868, %v1956
    %v1958 = vpop.f32.mrf.mxu0
    %v1959 = vadd.f32 %v1870, %v1958
    %1960 = vmatmul.bf16.gmra.mxu0 %v1796
    %v1961 = vpop.f32.mrf.mxu0
    %v1962 = vadd.f32 %v1873, %v1961
    %v1963 = vpop.f32.mrf.mxu0
    %v1964 = vadd.f32 %v1875, %v1963
    %1965 = vmatmul.bf16.gmra.mxu0 %v1799
    %v1966 = vpop.f32.mrf.mxu0
    %v1967 = vadd.f32 %v1878, %v1966
    %v1968 = vpop.f32.mrf.mxu0
    %v1969 = vadd.f32 %v1880, %v1968
    %1970 = vmatmul.bf16.gmra.mxu0 %v1802
    %v1971 = vpop.f32.mrf.mxu0
    %v1972 = vadd.f32 %v1883, %v1971
    %v1973 = vpop.f32.mrf.mxu0
    %v1974 = vadd.f32 %v1885, %v1973
    %1975 = vmatmul.bf16.gmra.mxu0 %v1805
    %v1976 = vpop.f32.mrf.mxu0
    %v1977 = vadd.f32 %v1888, %v1976
    %v1978 = vpop.f32.mrf.mxu0
    %v1979 = vadd.f32 %v1890, %v1978
    %1980 = vmatmul.bf16.gmra.mxu0 %v1808
    %v1981 = vpop.f32.mrf.mxu0
    %v1982 = vadd.f32 %v1893, %v1981
    %v1983 = vpop.f32.mrf.mxu0
    %v1984 = vadd.f32 %v1895, %v1983
    %1985 = vmatmul.bf16.gmra.mxu0 %v1811
    %v1986 = vpop.f32.mrf.mxu0
    %v1987 = vadd.f32 %v1898, %v1986
    %v1988 = vpop.f32.mrf.mxu0
    %v1989 = vadd.f32 %v1900, %v1988
    %1990 = vdwg.mxu0
    %v1991 = vld [vmem:[%s3] sm:$0xff]
    %v1992 = vld [vmem:[%s3 + $0x8] sm:$0xff]
    %v1993 = vadd.f32 %v1912, %v1991
    %v1994 = vadd.f32 %v1914, %v1992
    %v1995 = vadd.f32 %v1917, %v1991
    %v1996 = vadd.f32 %v1919, %v1992
    %v1997 = vadd.f32 %v1922, %v1991
    %v1998 = vadd.f32 %v1924, %v1992
    %v1999 = vadd.f32 %v1927, %v1991
    %v2000 = vadd.f32 %v1929, %v1992
    %v2001 = vadd.f32 %v1932, %v1991
    %v2002 = vadd.f32 %v1934, %v1992
    %v2003 = vadd.f32 %v1937, %v1991
    %v2004 = vadd.f32 %v1939, %v1992
    %v2005 = vadd.f32 %v1942, %v1991
    %v2006 = vadd.f32 %v1944, %v1992
    %v2007 = vadd.f32 %v1947, %v1991
    %v2008 = vadd.f32 %v1949, %v1992
    %v2009 = vadd.f32 %v1952, %v1991
    %v2010 = vadd.f32 %v1954, %v1992
    %v2011 = vadd.f32 %v1957, %v1991
    %v2012 = vadd.f32 %v1959, %v1992
    %v2013 = vadd.f32 %v1962, %v1991
    %v2014 = vadd.f32 %v1964, %v1992
    %v2015 = vadd.f32 %v1967, %v1991
    %v2016 = vadd.f32 %v1969, %v1992
    %v2017 = vadd.f32 %v1972, %v1991
    %v2018 = vadd.f32 %v1974, %v1992
    %v2019 = vadd.f32 %v1977, %v1991
    %v2020 = vadd.f32 %v1979, %v1992
    %v2021 = vadd.f32 %v1982, %v1991
    %v2022 = vadd.f32 %v1984, %v1992
    %v2023 = vadd.f32 %v1987, %v1991
    %v2024 = vadd.f32 %v1989, %v1992
    %v2025 = vmax.f32 %v1993, 0.0
    %v2026 = vmax.f32 %v1994, 0.0
    %v2027 = vmax.f32 %v1995, 0.0
    %v2028 = vmax.f32 %v1996, 0.0
    %v2029 = vmax.f32 %v1997, 0.0
    %v2030 = vmax.f32 %v1998, 0.0
    %v2031 = vmax.f32 %v1999, 0.0
    %v2032 = vmax.f32 %v2000, 0.0
    %v2033 = vmax.f32 %v2001, 0.0
    %v2034 = vmax.f32 %v2002, 0.0
    %v2035 = vmax.f32 %v2003, 0.0
    %v2036 = vmax.f32 %v2004, 0.0
    %v2037 = vmax.f32 %v2005, 0.0
    %v2038 = vmax.f32 %v2006, 0.0
    %v2039 = vmax.f32 %v2007, 0.0
    %v2040 = vmax.f32 %v2008, 0.0
    %v2041 = vmax.f32 %v2009, 0.0
    %v2042 = vmax.f32 %v2010, 0.0
    %v2043 = vmax.f32 %v2011, 0.0
    %v2044 = vmax.f32 %v2012, 0.0
    %v2045 = vmax.f32 %v2013, 0.0
    %v2046 = vmax.f32 %v2014, 0.0
    %v2047 = vmax.f32 %v2015, 0.0
    %v2048 = vmax.f32 %v2016, 0.0
    %v2049 = vmax.f32 %v2017, 0.0
    %v2050 = vmax.f32 %v2018, 0.0
    %v2051 = vmax.f32 %v2019, 0.0
    %v2052 = vmax.f32 %v2020, 0.0
    %v2053 = vmax.f32 %v2021, 0.0
    %v2054 = vmax.f32 %v2022, 0.0
    %v2055 = vmax.f32 %v2023, 0.0
    %v2056 = vmax.f32 %v2024, 0.0
    %vm2057 = vcmask 392192
    %v2058 = vsel %vm2057, %v2025, -inf
    %v2059 = vsel %vm2057, %v2026, -inf
    %v2060 = vmax.f32 %v2058, %v2059
    %v2061 = vrot.slane %v2060, 4
    %v2062 = vmax.f32 %v2060, %v2061
    %v2063 = vrot.slane %v2062, 2
    %v2064 = vmax.f32 %v2062, %v2063
    %v2065 = vrot.slane %v2064, 1
    %v2066 = vmax.f32 %v2064, %v2065
    %v2067 = vsel %vm2057, %v2027, -inf
    %v2068 = vsel %vm2057, %v2028, -inf
    %v2069 = vmax.f32 %v2067, %v2068
    %v2070 = vrot.slane %v2069, 4
    %v2071 = vmax.f32 %v2069, %v2070
    %v2072 = vrot.slane %v2071, 2
    %v2073 = vmax.f32 %v2071, %v2072
    %v2074 = vrot.slane %v2073, 1
    %v2075 = vmax.f32 %v2073, %v2074
    %v2076 = vsel %vm2057, %v2029, -inf
    %v2077 = vsel %vm2057, %v2030, -inf
    %v2078 = vmax.f32 %v2076, %v2077
    %v2079 = vrot.slane %v2078, 4
    %v2080 = vmax.f32 %v2078, %v2079
    %v2081 = vrot.slane %v2080, 2
    %v2082 = vmax.f32 %v2080, %v2081
    %v2083 = vrot.slane %v2082, 1
    %v2084 = vmax.f32 %v2082, %v2083
    %v2085 = vsel %vm2057, %v2031, -inf
    %v2086 = vsel %vm2057, %v2032, -inf
    %v2087 = vmax.f32 %v2085, %v2086
    %v2088 = vrot.slane %v2087, 4
    %v2089 = vmax.f32 %v2087, %v2088
    %v2090 = vrot.slane %v2089, 2
    %v2091 = vmax.f32 %v2089, %v2090
    %v2092 = vrot.slane %v2091, 1
    %v2093 = vmax.f32 %v2091, %v2092
    %v2094 = vsel %vm2057, %v2033, -inf
    %v2095 = vsel %vm2057, %v2034, -inf
    %v2096 = vmax.f32 %v2094, %v2095
    %v2097 = vrot.slane %v2096, 4
    %v2098 = vmax.f32 %v2096, %v2097
    %v2099 = vrot.slane %v2098, 2
    %v2100 = vmax.f32 %v2098, %v2099
    %v2101 = vrot.slane %v2100, 1
    %v2102 = vmax.f32 %v2100, %v2101
    %v2103 = vsel %vm2057, %v2035, -inf
    %v2104 = vsel %vm2057, %v2036, -inf
    %v2105 = vmax.f32 %v2103, %v2104
    %v2106 = vrot.slane %v2105, 4
    %v2107 = vmax.f32 %v2105, %v2106
    %v2108 = vrot.slane %v2107, 2
    %v2109 = vmax.f32 %v2107, %v2108
    %v2110 = vrot.slane %v2109, 1
    %v2111 = vmax.f32 %v2109, %v2110
    %v2112 = vsel %vm2057, %v2037, -inf
    %v2113 = vsel %vm2057, %v2038, -inf
    %v2114 = vmax.f32 %v2112, %v2113
    %v2115 = vrot.slane %v2114, 4
    %v2116 = vmax.f32 %v2114, %v2115
    %v2117 = vrot.slane %v2116, 2
    %v2118 = vmax.f32 %v2116, %v2117
    %v2119 = vrot.slane %v2118, 1
    %v2120 = vmax.f32 %v2118, %v2119
    %v2121 = vsel %vm2057, %v2039, -inf
    %v2122 = vsel %vm2057, %v2040, -inf
    %v2123 = vmax.f32 %v2121, %v2122
    %v2124 = vrot.slane %v2123, 4
    %v2125 = vmax.f32 %v2123, %v2124
    %v2126 = vrot.slane %v2125, 2
    %v2127 = vmax.f32 %v2125, %v2126
    %v2128 = vrot.slane %v2127, 1
    %v2129 = vmax.f32 %v2127, %v2128
    %v2130 = vsel %vm2057, %v2041, -inf
    %v2131 = vsel %vm2057, %v2042, -inf
    %v2132 = vmax.f32 %v2130, %v2131
    %v2133 = vrot.slane %v2132, 4
    %v2134 = vmax.f32 %v2132, %v2133
    %v2135 = vrot.slane %v2134, 2
    %v2136 = vmax.f32 %v2134, %v2135
    %v2137 = vrot.slane %v2136, 1
    %v2138 = vmax.f32 %v2136, %v2137
    %v2139 = vsel %vm2057, %v2043, -inf
    %v2140 = vsel %vm2057, %v2044, -inf
    %v2141 = vmax.f32 %v2139, %v2140
    %v2142 = vrot.slane %v2141, 4
    %v2143 = vmax.f32 %v2141, %v2142
    %v2144 = vrot.slane %v2143, 2
    %v2145 = vmax.f32 %v2143, %v2144
    %v2146 = vrot.slane %v2145, 1
    %v2147 = vmax.f32 %v2145, %v2146
    %v2148 = vsel %vm2057, %v2045, -inf
    %v2149 = vsel %vm2057, %v2046, -inf
    %v2150 = vmax.f32 %v2148, %v2149
    %v2151 = vrot.slane %v2150, 4
    %v2152 = vmax.f32 %v2150, %v2151
    %v2153 = vrot.slane %v2152, 2
    %v2154 = vmax.f32 %v2152, %v2153
    %v2155 = vrot.slane %v2154, 1
    %v2156 = vmax.f32 %v2154, %v2155
    %v2157 = vsel %vm2057, %v2047, -inf
    %v2158 = vsel %vm2057, %v2048, -inf
    %v2159 = vmax.f32 %v2157, %v2158
    %v2160 = vrot.slane %v2159, 4
    %v2161 = vmax.f32 %v2159, %v2160
    %v2162 = vrot.slane %v2161, 2
    %v2163 = vmax.f32 %v2161, %v2162
    %v2164 = vrot.slane %v2163, 1
    %v2165 = vmax.f32 %v2163, %v2164
    %v2166 = vsel %vm2057, %v2049, -inf
    %v2167 = vsel %vm2057, %v2050, -inf
    %v2168 = vmax.f32 %v2166, %v2167
    %v2169 = vrot.slane %v2168, 4
    %v2170 = vmax.f32 %v2168, %v2169
    %v2171 = vrot.slane %v2170, 2
    %v2172 = vmax.f32 %v2170, %v2171
    %v2173 = vrot.slane %v2172, 1
    %v2174 = vmax.f32 %v2172, %v2173
    %v2175 = vsel %vm2057, %v2051, -inf
    %v2176 = vsel %vm2057, %v2052, -inf
    %v2177 = vmax.f32 %v2175, %v2176
    %v2178 = vrot.slane %v2177, 4
    %v2179 = vmax.f32 %v2177, %v2178
    %v2180 = vrot.slane %v2179, 2
    %v2181 = vmax.f32 %v2179, %v2180
    %v2182 = vrot.slane %v2181, 1
    %v2183 = vmax.f32 %v2181, %v2182
    %v2184 = vsel %vm2057, %v2053, -inf
    %v2185 = vsel %vm2057, %v2054, -inf
    %v2186 = vmax.f32 %v2184, %v2185
    %v2187 = vrot.slane %v2186, 4
    %v2188 = vmax.f32 %v2186, %v2187
    %v2189 = vrot.slane %v2188, 2
    %v2190 = vmax.f32 %v2188, %v2189
    %v2191 = vrot.slane %v2190, 1
    %v2192 = vmax.f32 %v2190, %v2191
    %v2193 = vsel %vm2057, %v2055, -inf
    %v2194 = vsel %vm2057, %v2056, -inf
    %v2195 = vmax.f32 %v2193, %v2194
    %v2196 = vrot.slane %v2195, 4
    %v2197 = vmax.f32 %v2195, %v2196
    %v2198 = vrot.slane %v2197, 2
    %v2199 = vmax.f32 %v2197, %v2198
    %v2200 = vrot.slane %v2199, 1
    %v2201 = vmax.f32 %v2199, %v2200
    %v2202 = vpack.c.bf16 %v2066, %v2066
    %v2203 = vpack.c.bf16 %v2075, %v2075
    %v2204 = vpack.c.bf16 %v2084, %v2084
    %v2205 = vpack.c.bf16 %v2093, %v2093
    %v2206 = vpack.c.bf16 %v2102, %v2102
    %v2207 = vpack.c.bf16 %v2111, %v2111
    %v2208 = vpack.c.bf16 %v2120, %v2120
    %v2209 = vpack.c.bf16 %v2129, %v2129
    %v2210 = vpack.c.bf16 %v2138, %v2138
    %v2211 = vpack.c.bf16 %v2147, %v2147
    %v2212 = vpack.c.bf16 %v2156, %v2156
    %v2213 = vpack.c.bf16 %v2165, %v2165
    %v2214 = vpack.c.bf16 %v2174, %v2174
    %v2215 = vpack.c.bf16 %v2183, %v2183
    %v2216 = vpack.c.bf16 %v2192, %v2192
    %v2217 = vpack.c.bf16 %v2201, %v2201
    %v2218 = vld [vmem:[%s4] sm:$0xf]
    %v2219 = vld [vmem:[%s4 + $0x4] sm:$0xf]
    %v2220 = vld [vmem:[%s4 + $0x8] sm:$0xf]
    %v2221 = vld [vmem:[%s4 + $0xc] sm:$0xf]
    %v2222 = vld [vmem:[%s4 + $0x10] sm:$0xf]
    %v2223 = vld [vmem:[%s4 + $0x14] sm:$0xf]
    %v2224 = vld [vmem:[%s5] sm:$0x1]
    %v2226 = vperm.slane %v2224, 0
    %v2244 = vunpack.c.l.b16 %v2202
    %v2245 = vunpack.c.l.b16 %v2203
    %v2246 = vunpack.c.l.b16 %v2204
    %v2247 = vunpack.c.l.b16 %v2205
    %v2248 = vunpack.c.l.b16 %v2206
    %v2249 = vunpack.c.l.b16 %v2207
    %v2250 = vunpack.c.l.b16 %v2208
    %v2251 = vunpack.c.l.b16 %v2209
    %v2252 = vunpack.c.l.b16 %v2210
    %v2253 = vunpack.c.l.b16 %v2211
    %v2254 = vunpack.c.l.b16 %v2212
    %v2255 = vunpack.c.l.b16 %v2213
    %v2256 = vunpack.c.l.b16 %v2214
    %v2257 = vunpack.c.l.b16 %v2215
    %v2258 = vunpack.c.l.b16 %v2216
    %v2259 = vunpack.c.l.b16 %v2217
    %vm2260 = vcmask 1041409
    %v2261 = vsel %vm2260, %v2245, %v2244
    %vm2262 = vcmask 1042434
    %v2263 = vsel %vm2262, %v2246, %v2261
    %vm2264 = vcmask 1043459
    %v2265 = vsel %vm2264, %v2247, %v2263
    %vm2266 = vcmask 1044484
    %v2267 = vsel %vm2266, %v2248, %v2265
    %vm2268 = vcmask 1045509
    %v2269 = vsel %vm2268, %v2249, %v2267
    %vm2270 = vcmask 1046534
    %v2271 = vsel %vm2270, %v2250, %v2269
    %vm2272 = vcmask 1047559
    %v2273 = vsel %vm2272, %v2251, %v2271
    %v2274 = vsel %vm2260, %v2253, %v2252
    %v2275 = vsel %vm2262, %v2254, %v2274
    %v2276 = vsel %vm2264, %v2255, %v2275
    %v2277 = vsel %vm2266, %v2256, %v2276
    %v2278 = vsel %vm2268, %v2257, %v2277
    %v2279 = vsel %vm2270, %v2258, %v2278
    %v2280 = vsel %vm2272, %v2259, %v2279
    %v2281 = vpack.c.b16 %v2280, %v2273
    %v2288 = vunpack.c.l.b16 %v2218
    %v2289 = vunpack.c.l.b16 %v2219
    %v2290 = vunpack.c.l.b16 %v2220
    %v2291 = vunpack.c.l.b16 %v2221
    %v2292 = vunpack.c.l.b16 %v2222
    %v2293 = vunpack.c.l.b16 %v2223
    %v2294 = vpack.c.b16 %v2289, %v2288
    %v2295 = vpack.c.b16 %v2291, %v2290
    %v2296 = vpack.c.b16 %v2293, %v2292
    %v2301 = vsel %vm2057, %v2281, 0
    %2303 = vmatpush.bf16.msra.mxu0 0
    %2304 = vmatpush.bf16.msra.mxu0 0
    %2305 = vmatpush.bf16.msra.mxu0 0
    %2306 = vmatpush.bf16.msra.mxu0 0
    %2307 = vmatpush.bf16.msra.mxu0 0
    %2308 = vmatpush.bf16.msra.mxu0 %v2296
    %2309 = vmatpush.bf16.msra.mxu0 %v2295
    %2310 = vmatpush.bf16.msra.mxu0 %v2294
    %2311 = vmatmul.bf16.gmra.mxu0 %v2301
    %v2312 = vpop.f32.mrf.mxu0
    %v2313 = vadd.f32 %v2226, %v2312
    %v2314 = vpop.f32.mrf.mxu0
    %v2315 = vadd.f32 %v2226, %v2314
    %2316 = vdwg.mxu0
    %2317 = vst [vmem:[#allocation2] sm:$0xff] %v2313
    %2318 = vst [vmem:[#allocation2 + $0x8] sm:$0xff] %v2315
    // Predicated region
    $region26: #{tpu_custom_call.1} parent=1 // pred_check
      _
    $region27: #{tpu_custom_call.1} parent=1 // pred_check_branch
      %2320 = sbr.rel (0) target = $region29
    $region28: #{tpu_custom_call.1} parent=1 // pred_region
      %2322 = vsyncadd [#allocation3], 0
      %s2323 = sshll.u32 [#allocation2], 4
      %s2324 = int_to_ptr.vmem [resolvable:$true] %s2323
      %s2325 = sshll.u32 %s6, 4
      %s2326 = int_to_ptr.hbm [resolvable:$true] %s2325
      %2331 = dma.vmem_to_hbm [thread:$0]  %s2324, 256, %s2326, [#allocation3], 128, 128, 8
    $region29: #{tpu_custom_call.1} parent=1 // pred_fallthru
      _
    // Predicated region
    $region30: #{tpu_custom_call.1} parent=1 // pred_check
      _
    $region31: #{tpu_custom_call.1} parent=1 // pred_check_branch
      %2333 = sbr.rel (0) target = $region33
    $region32: #{tpu_custom_call.1} parent=1 // pred_region
      %2335 = dma.done [#allocation3], 256
    $region33: #{tpu_custom_call.1} parent=1 // pred_fallthru
      _
    %2336 = vsyncpa [#allocation3], 1

</llo_original>
